<compile_context>
chip_gen: v5e
topology: v5e:2x2
jax: 0.10.0
libtpu: 0.0.40
codegen_flags: <defaults>
</compile_context>

<pallas_src>
import functools
import math

import jax
import jax.numpy as jnp
from jax.experimental import pallas as pl
from jax.experimental.pallas import tpu as pltpu


# ----------------------------------------------------------------------------
# helpers
# ----------------------------------------------------------------------------
def _spec(shape, index_map, buffers=None):
    """BlockSpec with an optional explicit buffer count (graceful fallback if
    the installed jax does not support pipeline_mode)."""
    if buffers is None:
        return pl.BlockSpec(shape, index_map)
    try:
        return pl.BlockSpec(shape, index_map, pipeline_mode=pl.Buffered(buffers))
    except Exception:
        return pl.BlockSpec(shape, index_map)


def _hw_defaults():
    """Return (85%-of-physical VMEM cap in bytes, MXU-matched tile size)."""
    vmem_cap = 128 * 1024 * 1024
    try:
        info = pltpu.get_tpu_info()
        vmem_cap = int(getattr(info, "vmem_capacity_bytes", vmem_cap))
    except Exception:
        pass
    kind = ""
    try:
        kind = jax.devices()[0].device_kind.lower()
    except Exception:
        pass
    # v4/v5-class MXU is 128-wide (256-wide tiles buy nothing); v6e/v7x is 256.
    mxu_tile = 128 if ("v4" in kind or "v5" in kind) else 256
    return int(0.85 * vmem_cap), mxu_tile


def _pick_seq_tile(total, preferred):
    """Largest multiple-of-8 tile <= preferred that divides `total`."""
    if total <= preferred:
        return total
    t = preferred - (preferred % 8)
    while t >= 8:
        if total % t == 0:
            return t
        t -= 8
    return total


def _pick_lane_tile(total, preferred):
    """Lane-major BlockSpec tile: multiple of 128 dividing total, or full."""
    if total <= preferred:
        return total
    t = preferred - (preferred % 128)
    while t >= 128:
        if total % t == 0:
            return t
        t -= 128
    return total  # TODO(synk): pad ragged class counts instead of full extent


# ----------------------------------------------------------------------------
# Kernel 1: one pre-LN transformer encoder block (the `blocks` module).
# Grid iterates over batch; flash-style query/KV tiling inside the kernel.
# bf16 MXU inputs, f32 accumulation, f32 residual stream / LN / softmax stats.
# ----------------------------------------------------------------------------
def transformer_block_kernel(x_ref,
                             ln1_g_ref, ln1_b_ref,
                             wq_ref, bq_ref, wk_ref, bk_ref, wv_ref, bv_ref,
                             wo_ref, bo_ref,
                             ln2_g_ref, ln2_b_ref,
                             w1_ref, b1_ref, w2_ref, b2_ref,
                             o_ref, xcls_ref,
                             q_scr, k_scr, v_scr, attn_scr,
                             *, num_heads, block_q, block_k):
    S, D = x_ref.shape
    H = num_heads
    dh = D // H
    Tq, Tk = block_q, block_k
    nq, nk = S // Tq, S // Tk
    cdt = jnp.bfloat16                                   # MXU compute dtype

    x = x_ref[...].astype(jnp.float32)                   # residual stream (f32)

    def layer_norm(h, g, b):
        mu = jnp.mean(h, axis=-1, keepdims=True)
        var = jnp.mean((h - mu) ** 2, axis=-1, keepdims=True)
        return ((h - mu) * jax.lax.rsqrt(var + 1e-5)
                * g.astype(jnp.float32) + b.astype(jnp.float32))

    # ---- multi-head self-attention (pre-LN) ----
    h1 = layer_norm(x, ln1_g_ref[...], ln1_b_ref[...]).astype(cdt)      # (S, D)
    q = (jnp.dot(h1, wq_ref[...].astype(cdt), preferred_element_type=jnp.float32)
         + bq_ref[...].astype(jnp.float32)) * (1.0 / math.sqrt(dh))
    k = (jnp.dot(h1, wk_ref[...].astype(cdt), preferred_element_type=jnp.float32)
         + bk_ref[...].astype(jnp.float32))
    v = (jnp.dot(h1, wv_ref[...].astype(cdt), preferred_element_type=jnp.float32)
         + bv_ref[...].astype(jnp.float32))

    # Head split done ONCE on bf16 data (half the XLU/vst traffic of f32).
    def split_heads(t):                                   # (S, D) -> (H, S, dh)
        return t.astype(cdt).reshape(S, H, dh).transpose(1, 0, 2)

    q_scr[...] = split_heads(q)
    k_scr[...] = split_heads(k)
    v_scr[...] = split_heads(v)

    # Flash-style attention: q-tiles x KV-tiles, online softmax accumulators.
    @pl.loop(0, nq)
    def _q_tile(qi):
        q0 = pl.multiple_of(qi * Tq, Tq)
        q_t = q_scr[:, pl.ds(q0, Tq), :]                  # (H, Tq, dh) bf16

        def kv_tile(ki, st):
            m_i, l_i, acc = st
            k0 = pl.multiple_of(ki * Tk, Tk)
            k_t = k_scr[:, pl.ds(k0, Tk), :]
            v_t = v_scr[:, pl.ds(k0, Tk), :]
            s = jnp.einsum('hqd,hkd->hqk', q_t, k_t,
                           preferred_element_type=jnp.float32)     # (H,Tq,Tk)
            m_new = jnp.maximum(m_i, jnp.max(s, axis=-1, keepdims=True))
            alpha = jnp.exp(m_i - m_new)
            p = jnp.exp(s - m_new)
            l_new = alpha * l_i + jnp.sum(p, axis=-1, keepdims=True)
            acc_new = alpha * acc + jnp.einsum(
                'hqk,hkd->hqd', p.astype(cdt), v_t,
                preferred_element_type=jnp.float32)
            return m_new, l_new, acc_new

        init = (jnp.full((H, Tq, 1), -jnp.inf, jnp.float32),
                jnp.zeros((H, Tq, 1), jnp.float32),
                jnp.zeros((H, Tq, dh), jnp.float32))
        _, l_f, acc_f = jax.lax.fori_loop(0, nk, kv_tile, init)
        attn_scr[:, pl.ds(q0, Tq), :] = acc_f * pl.reciprocal(l_f, approx=True)

    # head merge (single bf16 relayout) + output projection (full-K matmul)
    attn = attn_scr[...].astype(cdt).transpose(1, 0, 2).reshape(S, D)
    x = x + (jnp.dot(attn, wo_ref[...].astype(cdt),
                     preferred_element_type=jnp.float32)
             + bo_ref[...].astype(jnp.float32))

    # ---- feed-forward MLP (pre-LN), exact-erf GELU ----
    def erf_approx(z):
        # Abramowitz-Stegun 7.1.26, |err| <= 1.5e-7 -- matches PyTorch's exact
        # erf GELU, lowers with only exp / mul / div / select.
        a1, a2, a3, a4, a5 = (0.254829592, -0.284496736, 1.421413741,
                              -1.453152027, 1.061405429)
        az = jnp.abs(z)
        t = 1.0 / (1.0 + 0.3275911 * az)
        poly = ((((a5 * t + a4) * t + a3) * t + a2) * t + a1) * t
        y = 1.0 - poly * jnp.exp(-az * az)
        return jnp.where(z >= 0, y, -y)

    h2 = layer_norm(x, ln2_g_ref[...], ln2_b_ref[...]).astype(cdt)
    h2 = (jnp.dot(h2, w1_ref[...].astype(cdt), preferred_element_type=jnp.float32)
          + b1_ref[...].astype(jnp.float32))
    h2 = (0.5 * h2 * (1.0 + erf_approx(h2 * (1.0 / math.sqrt(2.0))))).astype(cdt)
    h2 = (jnp.dot(h2, w2_ref[...].astype(cdt), preferred_element_type=jnp.float32)
          + b2_ref[...].astype(jnp.float32))
    x = x + h2

    o_ref[...] = x.astype(o_ref.dtype)
    # CLS row emitted directly (lane-dense slab for the loss kernel; no
    # strided XLA slice between the two pallas_calls).
    xcls_ref[...] = x[0:1, :].astype(xcls_ref.dtype)


# ----------------------------------------------------------------------------
# Kernel 2: SVP projection v = x_cls @ Rt, mean cross-entropy and
# feature-alignment losses.  Gridded over class tiles with running
# max / logsumexp / norm accumulators in VMEM scratch.
# ----------------------------------------------------------------------------
def svp_loss_kernel(xcls_ref, rt_ref, tgt_ref, prev_ref,
                    v_ref, ce_ref, fa_ref,
                    m_scr, l_scr, pick_scr, sv_scr, sp_scr, vp_scr,
                    *, compute_ce, compute_fa, num_classes):
    ci = pl.program_id(0)
    nc = pl.num_programs(0)
    B, Tc = v_ref.shape
    cdt = jnp.bfloat16

    # TODO(synk): dropout on the CLS feature (p=0.1) is eval-mode identity.
    logits = jnp.dot(xcls_ref[...].astype(cdt), rt_ref[...].astype(cdt),
                     preferred_element_type=jnp.float32)          # (B, Tc)
    v_ref[...] = logits.astype(v_ref.dtype)

    @pl.when(ci == 0)
    def _init():
        ce_ref[0, 0] = jnp.float32(0.0)
        fa_ref[0, 0] = jnp.float32(0.0)
        if compute_ce:
            m_scr[...] = jnp.full_like(m_scr, -jnp.inf)
            l_scr[...] = jnp.zeros_like(l_scr)
            pick_scr[...] = jnp.zeros_like(pick_scr)
        if compute_fa:
            sv_scr[...] = jnp.zeros_like(sv_scr)
            sp_scr[...] = jnp.zeros_like(sp_scr)
            vp_scr[...] = jnp.zeros_like(vp_scr)

    if compute_ce:
        # online logsumexp over class tiles + target-logit pick
        m_prev = m_scr[...]
        m_new = jnp.maximum(m_prev, jnp.max(logits, axis=-1, keepdims=True))
        l_scr[...] = (l_scr[...] * jnp.exp(m_prev - m_new)
                      + jnp.sum(jnp.exp(logits - m_new), axis=-1, keepdims=True))
        m_scr[...] = m_new
        cls_ids = ci * Tc + jax.lax.broadcasted_iota(jnp.int32, (B, Tc), 1)
        pick_scr[...] += jnp.sum(
            jnp.where(cls_ids == tgt_ref[...], logits, 0.0),
            axis=-1, keepdims=True)

        @pl.when(ci == nc - 1)
        def _finish_ce():
            lse = m_scr[...] + jnp.log(l_scr[...])
            ce_ref[0, 0] = jnp.mean(lse - pick_scr[...])

    if compute_fa:
        p = prev_ref[...].astype(jnp.float32)
        sv_scr[...] += jnp.sum(logits * logits, axis=-1, keepdims=True)
        sp_scr[...] += jnp.sum(p * p, axis=-1, keepdims=True)
        vp_scr[...] += jnp.sum(logits * p, axis=-1, keepdims=True)

        @pl.when(ci == nc - 1)
        def _finish_fa():
            # MSE(normalize(v), normalize(prev)) expanded via per-row sums:
            # sum_c (v/nv - p/np)^2 = |v|^2/nv^2 + |p|^2/np^2 - 2<v,p>/(nv*np)
            eps = jnp.float32(1e-12)
            nv = jnp.maximum(jnp.sqrt(sv_scr[...]), eps)
            npr = jnp.maximum(jnp.sqrt(sp_scr[...]), eps)
            per_row = (sv_scr[...] / (nv * nv) + sp_scr[...] / (npr * npr)
                       - 2.0 * vp_scr[...] / (nv * npr))
            fa_ref[0, 0] = jnp.sum(per_row) / jnp.float32(B * num_classes)


# ----------------------------------------------------------------------------
# Python wrapper (tiling decisions, VMEM budgets, pallas_call setup).
# ----------------------------------------------------------------------------
def svp_block_forward(params, x, prev_v=None, target=None, *,
                      block_q=None, block_k=None, block_c=None):
    B, S, D = x.shape
    H = int(params["num_heads"])
    assert D % H == 0
    dh = D // H
    d_ff = params["w1"].shape[1]
    C = params["R"].shape[0]

    vmem_cap, mxu_tile = _hw_defaults()
    Tq = _pick_seq_tile(S, block_q or mxu_tile)
    Tk = _pick_seq_tile(S, block_k or mxu_tile)
    Tc = _pick_lane_tile(C, block_c or max(512, 2 * mxu_tile))

    weight_args = (
        params["ln1_g"], params["ln1_b"],
        params["wq"], params["bq"], params["wk"], params["bk"],
        params["wv"], params["bv"], params["wo"], params["bo"],
        params["ln2_g"], params["ln2_b"],
        params["w1"], params["b1"], params["w2"], params["b2"],
    )

    def weight_spec(a):
        nd = a.ndim
        # constant index map across the grid -> single-buffered (no 2nd copy)
        return _spec(a.shape, lambda b, _nd=nd: (0,) * _nd, buffers=1)

    weight_specs = [weight_spec(w) for w in weight_args]
    weights_bytes = sum(int(w.size) * w.dtype.itemsize for w in weight_args)

    # VMEM budget: weights x1 (Buffered(1)), pipeline blocks x2, internals x1.
    io_bytes = 2 * (2 * S * D * x.dtype.itemsize + D * 4)
    act_bytes = 4 * (5 * S * D)                          # f32 residual/LN/QKV
    act_bytes += 2 * (3 * S * D) + 4 * S * D             # bf16 q/k/v + f32 attn scratch
    act_bytes += 4 * (4 * H * Tq * Tk + 3 * H * Tq * dh)  # flash tile live set
    act_bytes += 4 * (2 * S * d_ff)                      # MLP hidden
    vmem_limit = int(min(vmem_cap,
                         max(32 * 1024 * 1024,
                             weights_bytes + io_bytes + act_bytes + (4 << 20))))

    blk_flops = B * (8 * S * D * D + 4 * S * S * D + 4 * S * D * d_ff)
    blk_transc = B * (H * S * S + S * d_ff)
    blk_bytes = 2 * B * S * D * x.dtype.itemsize + weights_bytes + B * D * 4

    x_out, x_cls = pl.pallas_call(
        functools.partial(transformer_block_kernel, num_heads=H,
                          block_q=Tq, block_k=Tk),
        out_shape=(jax.ShapeDtypeStruct((B, S, D), x.dtype),
                   jax.ShapeDtypeStruct((B, 1, D), jnp.float32)),
        grid=(B,),
        in_specs=[pl.BlockSpec((None, S, D), lambda b: (b, 0, 0))] + weight_specs,
        out_specs=(pl.BlockSpec((None, S, D), lambda b: (b, 0, 0)),
                   pl.BlockSpec((None, 1, D), lambda b: (b, 0, 0))),
        scratch_shapes=[pltpu.VMEM((H, S, dh), jnp.bfloat16),
                        pltpu.VMEM((H, S, dh), jnp.bfloat16),
                        pltpu.VMEM((H, S, dh), jnp.bfloat16),
                        pltpu.VMEM((H, S, dh), jnp.float32)],
        compiler_params=pltpu.CompilerParams(
            dimension_semantics=("parallel",),
            vmem_limit_bytes=vmem_limit),
        cost_estimate=pl.CostEstimate(flops=int(blk_flops),
                                      transcendentals=int(blk_transc),
                                      bytes_accessed=int(blk_bytes)),
    )(x, *weight_args)
    x_cls = x_cls.reshape(B, D)                          # free (size-1 middle dim)

    # ---- SVP projection + losses ----
    compute_ce = target is not None
    compute_fa = prev_v is not None

    Rt = params.get("Rt")
    if Rt is None:                                       # prefer the one-time init transpose
        Rt = params["R"].T

    tgt_in = (target.reshape(B, 1).astype(jnp.int32) if compute_ce
              else jnp.zeros((B, 1), jnp.int32))
    prev_in = (prev_v.astype(jnp.float32) if compute_fa
               else jnp.zeros((B, Tc), jnp.float32))
    prev_idx = (lambda c: (0, c)) if compute_fa else (lambda c: (0, 0))

    nc_tiles = C // Tc
    loss_vmem = int(min(vmem_cap,
                        max(16 * 1024 * 1024,
                            B * D * 4 + B * 4
                            + 2 * (D * Tc * Rt.dtype.itemsize + 3 * B * Tc * 4)
                            + 8 * B * Tc * 4 + (2 << 20))))
    loss_cost = pl.CostEstimate(
        flops=int(2 * B * D * C + 10 * B * C),
        transcendentals=int(B * C if compute_ce else 0),
        bytes_accessed=int(B * D * 4 + C * D * Rt.dtype.itemsize
                           + B * C * 4 * (1 + int(compute_fa))))

    v, ce, fa = pl.pallas_call(
        functools.partial(svp_loss_kernel, compute_ce=compute_ce,
                          compute_fa=compute_fa, num_classes=C),
        out_shape=(jax.ShapeDtypeStruct((B, C), jnp.float32),
                   jax.ShapeDtypeStruct((1, 1), jnp.float32),
                   jax.ShapeDtypeStruct((1, 1), jnp.float32)),
        grid=(nc_tiles,),
        in_specs=[_spec((B, D), lambda c: (0, 0), buffers=1),     # x_cls resident
                  pl.BlockSpec((D, Tc), lambda c: (0, c)),        # Rt streams
                  _spec((B, 1), lambda c: (0, 0), buffers=1),     # targets
                  pl.BlockSpec((B, Tc), prev_idx)],               # prev_v tiles
        out_specs=(pl.BlockSpec((B, Tc), lambda c: (0, c)),
                   pl.BlockSpec(memory_space=pltpu.MemorySpace.SMEM),
                   pl.BlockSpec(memory_space=pltpu.MemorySpace.SMEM)),
        scratch_shapes=[pltpu.VMEM((B, 1), jnp.float32) for _ in range(6)],
        compiler_params=pltpu.CompilerParams(
            dimension_semantics=("arbitrary",),
            vmem_limit_bytes=loss_vmem),
        cost_estimate=loss_cost,
    )(x_cls, Rt, tgt_in, prev_in)

    pred_loss = ce[0, 0] if compute_ce else 0.0
    fa_loss = fa[0, 0] if compute_fa else 0.0
    return x_out, v, pred_loss, fa_loss


# ----------------------------------------------------------------------------
# Deterministic parameter init (mirrors module __init__ shapes).
# Large matrices (and R) stored bf16 for MXU throughput / halved DMA;
# biases / LayerNorm params stay f32.  R keeps the PyTorch (C, D) layout and
# its (D, C) transpose is materialized once here for the loss kernel.
# ----------------------------------------------------------------------------
def init_params(key, d_model, num_heads, d_ff, num_classes,
                weight_dtype=jnp.bfloat16):
    ks = jax.random.split(key, 8)
    f32 = jnp.float32

    def lin(k, fan_in, shape):
        return (jax.random.normal(k, shape, f32) / math.sqrt(fan_in)).astype(weight_dtype)

    R = (jax.random.normal(ks[6], (num_classes, d_model), f32)
         / math.sqrt(num_classes)).astype(weight_dtype)
    return dict(
        num_heads=num_heads,
        ln1_g=jnp.ones((1, d_model), f32), ln1_b=jnp.zeros((1, d_model), f32),
        wq=lin(ks[0], d_model, (d_model, d_model)), bq=jnp.zeros((1, d_model), f32),
        wk=lin(ks[1], d_model, (d_model, d_model)), bk=jnp.zeros((1, d_model), f32),
        wv=lin(ks[2], d_model, (d_model, d_model)), bv=jnp.zeros((1, d_model), f32),
        wo=lin(ks[3], d_model, (d_model, d_model)), bo=jnp.zeros((1, d_model), f32),
        ln2_g=jnp.ones((1, d_model), f32), ln2_b=jnp.zeros((1, d_model), f32),
        w1=lin(ks[4], d_model, (d_model, d_ff)), b1=jnp.zeros((1, d_ff), f32),
        w2=lin(ks[5], d_ff, (d_ff, d_model)), b2=jnp.zeros((1, d_model), f32),
        R=R,            # (num_classes, d_model) -- PyTorch buffer layout
        Rt=R.T,         # (d_model, num_classes) -- one-time transpose for kernel
    )


if __name__ == "__main__":
    B, S, D, H, C = 2, 8, 32, 4, 16
    d_ff = 4 * D

    key = jax.random.PRNGKey(0)
    kx, kp, kv, kt = jax.random.split(key, 4)

    params = init_params(kp, D, H, d_ff, C)
    x = jax.random.normal(kx, (B, S, D), jnp.float32)
    prev_v = jax.random.normal(kv, (B, C), jnp.float32)
    target = jax.random.randint(kt, (B,), 0, C)

    # training-style call (CE + FA losses computed)
    x_out, v, pred_loss, fa_loss = svp_block_forward(
        params, x, prev_v=prev_v, target=target)
    jax.block_until_ready((x_out, v, pred_loss, fa_loss))

    assert x_out.shape == (B, S, D) and v.shape == (B, C)
    assert bool(jnp.isfinite(x_out).all()) and bool(jnp.isfinite(v).all())
    assert bool(jnp.isfinite(pred_loss)) and bool(jnp.isfinite(fa_loss))

    # inference-style call (loss branches statically compiled out)
    x_out2, v2, pl0, fa0 = svp_block_forward(params, x)
    jax.block_until_ready((x_out2, v2))
    assert x_out2.shape == (B, S, D) and v2.shape == (B, C)
    assert pl0 == 0.0 and fa0 == 0.0

    print("KERNEL_OK")
</pallas_src>

<mosaic_0001>
module attributes {stable_mosaic.version = 11 : i64} {
  func.func @transformer_block_kernel(%arg0: i32, %arg1: memref<1x8x32xf32, #tpu.memory_space<vmem>>, %arg2: memref<1x32xf32, #tpu.memory_space<vmem>>, %arg3: memref<1x32xf32, #tpu.memory_space<vmem>>, %arg4: memref<32x32xbf16, #tpu.memory_space<vmem>>, %arg5: memref<1x32xf32, #tpu.memory_space<vmem>>, %arg6: memref<32x32xbf16, #tpu.memory_space<vmem>>, %arg7: memref<1x32xf32, #tpu.memory_space<vmem>>, %arg8: memref<32x32xbf16, #tpu.memory_space<vmem>>, %arg9: memref<1x32xf32, #tpu.memory_space<vmem>>, %arg10: memref<32x32xbf16, #tpu.memory_space<vmem>>, %arg11: memref<1x32xf32, #tpu.memory_space<vmem>>, %arg12: memref<1x32xf32, #tpu.memory_space<vmem>>, %arg13: memref<1x32xf32, #tpu.memory_space<vmem>>, %arg14: memref<32x128xbf16, #tpu.memory_space<vmem>>, %arg15: memref<1x128xf32, #tpu.memory_space<vmem>>, %arg16: memref<128x32xbf16, #tpu.memory_space<vmem>>, %arg17: memref<1x32xf32, #tpu.memory_space<vmem>>, %arg18: memref<1x8x32xf32, #tpu.memory_space<vmem>>, %arg19: memref<1x1x32xf32, #tpu.memory_space<vmem>>, %arg20: memref<4x8x8xbf16, #tpu.memory_space<vmem>>, %arg21: memref<4x8x8xbf16, #tpu.memory_space<vmem>>, %arg22: memref<4x8x8xbf16, #tpu.memory_space<vmem>>, %arg23: memref<4x8x8xf32, #tpu.memory_space<vmem>>) attributes {dimension_semantics = [#tpu.dimension_semantics<parallel>], iteration_bounds = array<i64: 2>, scalar_prefetch = 0 : i64, scratch_operands = 4 : i64, tpu.core_type = #tpu.core_type<tc>, window_params = [{transform_indices = @transform_0, window_bounds = array<i64: 1, 8, 32>}, {pipeline_mode = #tpu.pipeline_mode<synchronous>, transform_indices = @transform_1, window_bounds = array<i64: 1, 32>}, {pipeline_mode = #tpu.pipeline_mode<synchronous>, transform_indices = @transform_2, window_bounds = array<i64: 1, 32>}, {pipeline_mode = #tpu.pipeline_mode<synchronous>, transform_indices = @transform_3, window_bounds = array<i64: 32, 32>}, {pipeline_mode = #tpu.pipeline_mode<synchronous>, transform_indices = @transform_4, window_bounds = array<i64: 1, 32>}, {pipeline_mode = #tpu.pipeline_mode<synchronous>, transform_indices = @transform_5, window_bounds = array<i64: 32, 32>}, {pipeline_mode = #tpu.pipeline_mode<synchronous>, transform_indices = @transform_6, window_bounds = array<i64: 1, 32>}, {pipeline_mode = #tpu.pipeline_mode<synchronous>, transform_indices = @transform_7, window_bounds = array<i64: 32, 32>}, {pipeline_mode = #tpu.pipeline_mode<synchronous>, transform_indices = @transform_8, window_bounds = array<i64: 1, 32>}, {pipeline_mode = #tpu.pipeline_mode<synchronous>, transform_indices = @transform_9, window_bounds = array<i64: 32, 32>}, {pipeline_mode = #tpu.pipeline_mode<synchronous>, transform_indices = @transform_10, window_bounds = array<i64: 1, 32>}, {pipeline_mode = #tpu.pipeline_mode<synchronous>, transform_indices = @transform_11, window_bounds = array<i64: 1, 32>}, {pipeline_mode = #tpu.pipeline_mode<synchronous>, transform_indices = @transform_12, window_bounds = array<i64: 1, 32>}, {pipeline_mode = #tpu.pipeline_mode<synchronous>, transform_indices = @transform_13, window_bounds = array<i64: 32, 128>}, {pipeline_mode = #tpu.pipeline_mode<synchronous>, transform_indices = @transform_14, window_bounds = array<i64: 1, 128>}, {pipeline_mode = #tpu.pipeline_mode<synchronous>, transform_indices = @transform_15, window_bounds = array<i64: 128, 32>}, {pipeline_mode = #tpu.pipeline_mode<synchronous>, transform_indices = @transform_16, window_bounds = array<i64: 1, 32>}, {transform_indices = @transform_17, window_bounds = array<i64: 1, 8, 32>}, {transform_indices = @transform_18, window_bounds = array<i64: 1, 1, 32>}]} {
    %c0 = arith.constant 0 : index
    %c0_0 = arith.constant 0 : index
    %c0_1 = arith.constant 0 : index
    %0 = vector.load %arg1[%c0, %c0_0, %c0_1] : memref<1x8x32xf32, #tpu.memory_space<vmem>>, vector<1x8x32xf32>
    %1 = vector.shape_cast %0 : vector<1x8x32xf32> to vector<8x32xf32>
    %c0_2 = arith.constant 0 : index
    %c0_3 = arith.constant 0 : index
    %2 = vector.load %arg2[%c0_2, %c0_3] : memref<1x32xf32, #tpu.memory_space<vmem>>, vector<1x32xf32>
    %c0_4 = arith.constant 0 : index
    %c0_5 = arith.constant 0 : index
    %3 = vector.load %arg3[%c0_4, %c0_5] : memref<1x32xf32, #tpu.memory_space<vmem>>, vector<1x32xf32>
    %cst = arith.constant dense<0.000000e+00> : vector<8xf32>
    %4 = vector.multi_reduction <add>, %1, %cst [1] : vector<8x32xf32> to vector<8xf32>
    %5 = vector.shape_cast %4 : vector<8xf32> to vector<8x1xf32>
    %cst_6 = arith.constant 3.200000e+01 : f32
    %6 = vector.broadcast %cst_6 : f32 to vector<8x1xf32>
    %7 = arith.divf %5, %6 : vector<8x1xf32>
    %8 = vector.broadcast %7 : vector<8x1xf32> to vector<8x32xf32>
    %9 = arith.subf %1, %8 : vector<8x32xf32>
    %10 = arith.mulf %9, %9 : vector<8x32xf32>
    %cst_7 = arith.constant dense<0.000000e+00> : vector<8xf32>
    %11 = vector.multi_reduction <add>, %10, %cst_7 [1] : vector<8x32xf32> to vector<8xf32>
    %12 = vector.shape_cast %11 : vector<8xf32> to vector<8x1xf32>
    %cst_8 = arith.constant 3.200000e+01 : f32
    %13 = vector.broadcast %cst_8 : f32 to vector<8x1xf32>
    %14 = arith.divf %12, %13 : vector<8x1xf32>
    %15 = vector.broadcast %7 : vector<8x1xf32> to vector<8x32xf32>
    %16 = arith.subf %1, %15 : vector<8x32xf32>
    %cst_9 = arith.constant 9.99999974E-6 : f32
    %17 = vector.broadcast %cst_9 : f32 to vector<8x1xf32>
    %18 = arith.addf %14, %17 : vector<8x1xf32>
    %19 = math.rsqrt %18 : vector<8x1xf32>
    %20 = vector.broadcast %19 : vector<8x1xf32> to vector<8x32xf32>
    %21 = arith.mulf %16, %20 : vector<8x32xf32>
    %22 = vector.broadcast %2 : vector<1x32xf32> to vector<8x32xf32>
    %23 = arith.mulf %21, %22 : vector<8x32xf32>
    %24 = vector.broadcast %3 : vector<1x32xf32> to vector<8x32xf32>
    %25 = arith.addf %23, %24 : vector<8x32xf32>
    %26 = arith.truncf %25 : vector<8x32xf32> to vector<8x32xbf16>
    %c0_10 = arith.constant 0 : index
    %c0_11 = arith.constant 0 : index
    %27 = vector.load %arg4[%c0_10, %c0_11] : memref<32x32xbf16, #tpu.memory_space<vmem>>, vector<32x32xbf16>
    %cst_12 = arith.constant dense<0.000000e+00> : vector<8x32xf32>
    %28 = tpu.matmul %26, %27, %cst_12 {dimension_numbers = #tpu.dot_dimension_numbers<[1], [0], [0], [1], [0, 0, 1, 1], [], []>} : vector<8x32xbf16>, vector<32x32xbf16>, vector<8x32xf32> -> vector<8x32xf32>
    %c0_13 = arith.constant 0 : index
    %c0_14 = arith.constant 0 : index
    %29 = vector.load %arg5[%c0_13, %c0_14] : memref<1x32xf32, #tpu.memory_space<vmem>>, vector<1x32xf32>
    %30 = vector.broadcast %29 : vector<1x32xf32> to vector<8x32xf32>
    %31 = arith.addf %28, %30 : vector<8x32xf32>
    %cst_15 = arith.constant 0.353553385 : f32
    %32 = vector.broadcast %cst_15 : f32 to vector<8x32xf32>
    %33 = arith.mulf %31, %32 : vector<8x32xf32>
    %c0_16 = arith.constant 0 : index
    %c0_17 = arith.constant 0 : index
    %34 = vector.load %arg6[%c0_16, %c0_17] : memref<32x32xbf16, #tpu.memory_space<vmem>>, vector<32x32xbf16>
    %cst_18 = arith.constant dense<0.000000e+00> : vector<8x32xf32>
    %35 = tpu.matmul %26, %34, %cst_18 {dimension_numbers = #tpu.dot_dimension_numbers<[1], [0], [0], [1], [0, 0, 1, 1], [], []>} : vector<8x32xbf16>, vector<32x32xbf16>, vector<8x32xf32> -> vector<8x32xf32>
    %c0_19 = arith.constant 0 : index
    %c0_20 = arith.constant 0 : index
    %36 = vector.load %arg7[%c0_19, %c0_20] : memref<1x32xf32, #tpu.memory_space<vmem>>, vector<1x32xf32>
    %37 = vector.broadcast %36 : vector<1x32xf32> to vector<8x32xf32>
    %38 = arith.addf %35, %37 : vector<8x32xf32>
    %c0_21 = arith.constant 0 : index
    %c0_22 = arith.constant 0 : index
    %39 = vector.load %arg8[%c0_21, %c0_22] : memref<32x32xbf16, #tpu.memory_space<vmem>>, vector<32x32xbf16>
    %cst_23 = arith.constant dense<0.000000e+00> : vector<8x32xf32>
    %40 = tpu.matmul %26, %39, %cst_23 {dimension_numbers = #tpu.dot_dimension_numbers<[1], [0], [0], [1], [0, 0, 1, 1], [], []>} : vector<8x32xbf16>, vector<32x32xbf16>, vector<8x32xf32> -> vector<8x32xf32>
    %c0_24 = arith.constant 0 : index
    %c0_25 = arith.constant 0 : index
    %41 = vector.load %arg9[%c0_24, %c0_25] : memref<1x32xf32, #tpu.memory_space<vmem>>, vector<1x32xf32>
    %42 = vector.broadcast %41 : vector<1x32xf32> to vector<8x32xf32>
    %43 = arith.addf %40, %42 : vector<8x32xf32>
    %44 = arith.truncf %33 : vector<8x32xf32> to vector<8x32xbf16>
    %45 = vector.shape_cast %44 : vector<8x32xbf16> to vector<8x4x8xbf16>
    %46 = tpu.transpose %45, [1, 0, 2] : vector<8x4x8xbf16> -> vector<4x8x8xbf16>
    %c0_26 = arith.constant 0 : index
    %c0_27 = arith.constant 0 : index
    %c0_28 = arith.constant 0 : index
    %47 = vector.load %arg20[%c0_26, %c0_27, %c0_28] : memref<4x8x8xbf16, #tpu.memory_space<vmem>>, vector<4x8x8xbf16>
    tpu.vector_store %arg20[%c0_26, %c0_27, %c0_28], %46 {strides = array<i32>} : memref<4x8x8xbf16, #tpu.memory_space<vmem>>, vector<4x8x8xbf16>,
    %48 = arith.truncf %38 : vector<8x32xf32> to vector<8x32xbf16>
    %49 = vector.shape_cast %48 : vector<8x32xbf16> to vector<8x4x8xbf16>
    %50 = tpu.transpose %49, [1, 0, 2] : vector<8x4x8xbf16> -> vector<4x8x8xbf16>
    %c0_29 = arith.constant 0 : index
    %c0_30 = arith.constant 0 : index
    %c0_31 = arith.constant 0 : index
    %51 = vector.load %arg21[%c0_29, %c0_30, %c0_31] : memref<4x8x8xbf16, #tpu.memory_space<vmem>>, vector<4x8x8xbf16>
    tpu.vector_store %arg21[%c0_29, %c0_30, %c0_31], %50 {strides = array<i32>} : memref<4x8x8xbf16, #tpu.memory_space<vmem>>, vector<4x8x8xbf16>,
    %52 = arith.truncf %43 : vector<8x32xf32> to vector<8x32xbf16>
    %53 = vector.shape_cast %52 : vector<8x32xbf16> to vector<8x4x8xbf16>
    %54 = tpu.transpose %53, [1, 0, 2] : vector<8x4x8xbf16> -> vector<4x8x8xbf16>
    %c0_32 = arith.constant 0 : index
    %c0_33 = arith.constant 0 : index
    %c0_34 = arith.constant 0 : index
    %55 = vector.load %arg22[%c0_32, %c0_33, %c0_34] : memref<4x8x8xbf16, #tpu.memory_space<vmem>>, vector<4x8x8xbf16>
    tpu.vector_store %arg22[%c0_32, %c0_33, %c0_34], %54 {strides = array<i32>} : memref<4x8x8xbf16, #tpu.memory_space<vmem>>, vector<4x8x8xbf16>,
    %c0_i32 = arith.constant 0 : i32
    %c1_i32 = arith.constant 1 : i32
    %56 = arith.muli %c0_i32, %c1_i32 : i32
    %c0_i32_35 = arith.constant 0 : i32
    %57 = arith.addi %c0_i32_35, %56 : i32
    %c8_i32 = arith.constant 8 : i32
    %58 = arith.muli %57, %c8_i32 : i32
    %59 = tpu.assume_multiple %58, 8 : i32
    %c0_36 = arith.constant 0 : index
    %60 = arith.index_cast %59 : i32 to index
    %c0_37 = arith.constant 0 : index
    %61 = vector.load %arg20[%c0_36, %60, %c0_37] : memref<4x8x8xbf16, #tpu.memory_space<vmem>>, vector<4x8x8xbf16>
    %cst_38 = arith.constant 0xFF800000 : f32
    %62 = vector.broadcast %cst_38 : f32 to vector<4x8x1xf32>
    %cst_39 = arith.constant 0.000000e+00 : f32
    %63 = vector.broadcast %cst_39 : f32 to vector<4x8x1xf32>
    %cst_40 = arith.constant 0.000000e+00 : f32
    %64 = vector.broadcast %cst_40 : f32 to vector<4x8x8xf32>
    %c0_i32_41 = arith.constant 0 : i32
    %c8_i32_42 = arith.constant 8 : i32
    %65 = arith.muli %c0_i32_41, %c8_i32_42 : i32
    %66 = tpu.assume_multiple %65, 8 : i32
    %c0_43 = arith.constant 0 : index
    %67 = arith.index_cast %66 : i32 to index
    %c0_44 = arith.constant 0 : index
    %68 = vector.load %arg21[%c0_43, %67, %c0_44] : memref<4x8x8xbf16, #tpu.memory_space<vmem>>, vector<4x8x8xbf16>
    %c0_45 = arith.constant 0 : index
    %69 = arith.index_cast %66 : i32 to index
    %c0_46 = arith.constant 0 : index
    %70 = vector.load %arg22[%c0_45, %69, %c0_46] : memref<4x8x8xbf16, #tpu.memory_space<vmem>>, vector<4x8x8xbf16>
    "tpu.trace_start"() <{level = 10 : i32, message = "hqd,hkd->hqk"}> : () -> ()
    %cst_47 = arith.constant dense<0.000000e+00> : vector<4x8x8xf32>
    %71 = tpu.matmul %61, %68, %cst_47 {dimension_numbers = #tpu.dot_dimension_numbers<[2], [2], [1], [1], [0, 0, 0, 1, 1, 1], [0], [0]>} : vector<4x8x8xbf16>, vector<4x8x8xbf16>, vector<4x8x8xf32> -> vector<4x8x8xf32>
    "tpu.trace_stop"() : () -> ()
    %cst_48 = arith.constant dense<0xFF800000> : vector<4x8xf32>
    %72 = vector.multi_reduction <maximumf>, %71, %cst_48 [2] : vector<4x8x8xf32> to vector<4x8xf32>
    %73 = vector.shape_cast %72 : vector<4x8xf32> to vector<4x8x1xf32>
    %74 = arith.maximumf %62, %73 : vector<4x8x1xf32>
    %75 = arith.subf %62, %74 : vector<4x8x1xf32>
    %76 = math.exp %75 : vector<4x8x1xf32>
    %77 = vector.broadcast %74 : vector<4x8x1xf32> to vector<4x8x8xf32>
    %78 = arith.subf %71, %77 : vector<4x8x8xf32>
    %79 = math.exp %78 : vector<4x8x8xf32>
    %80 = arith.mulf %76, %63 : vector<4x8x1xf32>
    %cst_49 = arith.constant dense<0.000000e+00> : vector<4x8xf32>
    %81 = vector.multi_reduction <add>, %79, %cst_49 [2] : vector<4x8x8xf32> to vector<4x8xf32>
    %82 = vector.shape_cast %81 : vector<4x8xf32> to vector<4x8x1xf32>
    %83 = arith.addf %80, %82 : vector<4x8x1xf32>
    %84 = vector.broadcast %76 : vector<4x8x1xf32> to vector<4x8x8xf32>
    %85 = arith.mulf %84, %64 : vector<4x8x8xf32>
    %86 = arith.truncf %79 : vector<4x8x8xf32> to vector<4x8x8xbf16>
    "tpu.trace_start"() <{level = 10 : i32, message = "hqk,hkd->hqd"}> : () -> ()
    %cst_50 = arith.constant dense<0.000000e+00> : vector<4x8x8xf32>
    %87 = tpu.matmul %86, %70, %cst_50 {dimension_numbers = #tpu.dot_dimension_numbers<[2], [1], [1], [2], [0, 0, 0, 1, 1, 2], [0], [0]>} : vector<4x8x8xbf16>, vector<4x8x8xbf16>, vector<4x8x8xf32> -> vector<4x8x8xf32>
    "tpu.trace_stop"() : () -> ()
    %88 = arith.addf %85, %87 : vector<4x8x8xf32>
    %c1_i32_51 = arith.constant 1 : i32
    %89 = tpu.reciprocal %83 {approx = true} : vector<4x8x1xf32> -> vector<4x8x1xf32>
    %90 = vector.broadcast %89 : vector<4x8x1xf32> to vector<4x8x8xf32>
    %91 = arith.mulf %88, %90 : vector<4x8x8xf32>
    %c0_52 = arith.constant 0 : index
    %92 = arith.index_cast %59 : i32 to index
    %c0_53 = arith.constant 0 : index
    %93 = vector.load %arg23[%c0_52, %92, %c0_53] : memref<4x8x8xf32, #tpu.memory_space<vmem>>, vector<4x8x8xf32>
    tpu.vector_store %arg23[%c0_52, %92, %c0_53], %91 {strides = array<i32>} : memref<4x8x8xf32, #tpu.memory_space<vmem>>, vector<4x8x8xf32>,
    %c1_i32_54 = arith.constant 1 : i32
    %c0_55 = arith.constant 0 : index
    %c0_56 = arith.constant 0 : index
    %c0_57 = arith.constant 0 : index
    %94 = vector.load %arg23[%c0_55, %c0_56, %c0_57] : memref<4x8x8xf32, #tpu.memory_space<vmem>>, vector<4x8x8xf32>
    %95 = arith.truncf %94 : vector<4x8x8xf32> to vector<4x8x8xbf16>
    %96 = tpu.transpose %95, [1, 0, 2] : vector<4x8x8xbf16> -> vector<8x4x8xbf16>
    %97 = vector.shape_cast %96 : vector<8x4x8xbf16> to vector<8x32xbf16>
    %c0_58 = arith.constant 0 : index
    %c0_59 = arith.constant 0 : index
    %98 = vector.load %arg10[%c0_58, %c0_59] : memref<32x32xbf16, #tpu.memory_space<vmem>>, vector<32x32xbf16>
    %cst_60 = arith.constant dense<0.000000e+00> : vector<8x32xf32>
    %99 = tpu.matmul %97, %98, %cst_60 {dimension_numbers = #tpu.dot_dimension_numbers<[1], [0], [0], [1], [0, 0, 1, 1], [], []>} : vector<8x32xbf16>, vector<32x32xbf16>, vector<8x32xf32> -> vector<8x32xf32>
    %c0_61 = arith.constant 0 : index
    %c0_62 = arith.constant 0 : index
    %100 = vector.load %arg11[%c0_61, %c0_62] : memref<1x32xf32, #tpu.memory_space<vmem>>, vector<1x32xf32>
    %101 = vector.broadcast %100 : vector<1x32xf32> to vector<8x32xf32>
    %102 = arith.addf %99, %101 : vector<8x32xf32>
    %103 = arith.addf %1, %102 : vector<8x32xf32>
    %c0_63 = arith.constant 0 : index
    %c0_64 = arith.constant 0 : index
    %104 = vector.load %arg12[%c0_63, %c0_64] : memref<1x32xf32, #tpu.memory_space<vmem>>, vector<1x32xf32>
    %c0_65 = arith.constant 0 : index
    %c0_66 = arith.constant 0 : index
    %105 = vector.load %arg13[%c0_65, %c0_66] : memref<1x32xf32, #tpu.memory_space<vmem>>, vector<1x32xf32>
    %cst_67 = arith.constant dense<0.000000e+00> : vector<8xf32>
    %106 = vector.multi_reduction <add>, %103, %cst_67 [1] : vector<8x32xf32> to vector<8xf32>
    %107 = vector.shape_cast %106 : vector<8xf32> to vector<8x1xf32>
    %cst_68 = arith.constant 3.200000e+01 : f32
    %108 = vector.broadcast %cst_68 : f32 to vector<8x1xf32>
    %109 = arith.divf %107, %108 : vector<8x1xf32>
    %110 = vector.broadcast %109 : vector<8x1xf32> to vector<8x32xf32>
    %111 = arith.subf %103, %110 : vector<8x32xf32>
    %112 = arith.mulf %111, %111 : vector<8x32xf32>
    %cst_69 = arith.constant dense<0.000000e+00> : vector<8xf32>
    %113 = vector.multi_reduction <add>, %112, %cst_69 [1] : vector<8x32xf32> to vector<8xf32>
    %114 = vector.shape_cast %113 : vector<8xf32> to vector<8x1xf32>
    %cst_70 = arith.constant 3.200000e+01 : f32
    %115 = vector.broadcast %cst_70 : f32 to vector<8x1xf32>
    %116 = arith.divf %114, %115 : vector<8x1xf32>
    %117 = vector.broadcast %109 : vector<8x1xf32> to vector<8x32xf32>
    %118 = arith.subf %103, %117 : vector<8x32xf32>
    %cst_71 = arith.constant 9.99999974E-6 : f32
    %119 = vector.broadcast %cst_71 : f32 to vector<8x1xf32>
    %120 = arith.addf %116, %119 : vector<8x1xf32>
    %121 = math.rsqrt %120 : vector<8x1xf32>
    %122 = vector.broadcast %121 : vector<8x1xf32> to vector<8x32xf32>
    %123 = arith.mulf %118, %122 : vector<8x32xf32>
    %124 = vector.broadcast %104 : vector<1x32xf32> to vector<8x32xf32>
    %125 = arith.mulf %123, %124 : vector<8x32xf32>
    %126 = vector.broadcast %105 : vector<1x32xf32> to vector<8x32xf32>
    %127 = arith.addf %125, %126 : vector<8x32xf32>
    %128 = arith.truncf %127 : vector<8x32xf32> to vector<8x32xbf16>
    %c0_72 = arith.constant 0 : index
    %c0_73 = arith.constant 0 : index
    %129 = vector.load %arg14[%c0_72, %c0_73] : memref<32x128xbf16, #tpu.memory_space<vmem>>, vector<32x128xbf16>
    %cst_74 = arith.constant dense<0.000000e+00> : vector<8x128xf32>
    %130 = tpu.matmul %128, %129, %cst_74 {dimension_numbers = #tpu.dot_dimension_numbers<[1], [0], [0], [1], [0, 0, 1, 1], [], []>} : vector<8x32xbf16>, vector<32x128xbf16>, vector<8x128xf32> -> vector<8x128xf32>
    %c0_75 = arith.constant 0 : index
    %c0_76 = arith.constant 0 : index
    %131 = vector.load %arg15[%c0_75, %c0_76] : memref<1x128xf32, #tpu.memory_space<vmem>>, vector<1x128xf32>
    %132 = vector.broadcast %131 : vector<1x128xf32> to vector<8x128xf32>
    %133 = arith.addf %130, %132 : vector<8x128xf32>
    %cst_77 = arith.constant 5.000000e-01 : f32
    %134 = vector.broadcast %cst_77 : f32 to vector<8x128xf32>
    %135 = arith.mulf %134, %133 : vector<8x128xf32>
    %cst_78 = arith.constant 0.707106769 : f32
    %136 = vector.broadcast %cst_78 : f32 to vector<8x128xf32>
    %137 = arith.mulf %133, %136 : vector<8x128xf32>
    %138 = math.absf %137 : vector<8x128xf32>
    %cst_79 = arith.constant 0.327591091 : f32
    %139 = vector.broadcast %cst_79 : f32 to vector<8x128xf32>
    %140 = arith.mulf %139, %138 : vector<8x128xf32>
    %cst_80 = arith.constant 1.000000e+00 : f32
    %141 = vector.broadcast %cst_80 : f32 to vector<8x128xf32>
    %142 = arith.addf %141, %140 : vector<8x128xf32>
    %cst_81 = arith.constant 1.000000e+00 : f32
    %143 = vector.broadcast %cst_81 : f32 to vector<8x128xf32>
    %144 = arith.divf %143, %142 : vector<8x128xf32>
    %cst_82 = arith.constant 1.06140542 : f32
    %145 = vector.broadcast %cst_82 : f32 to vector<8x128xf32>
    %146 = arith.mulf %145, %144 : vector<8x128xf32>
    %cst_83 = arith.constant -1.45315206 : f32
    %147 = vector.broadcast %cst_83 : f32 to vector<8x128xf32>
    %148 = arith.addf %146, %147 : vector<8x128xf32>
    %149 = arith.mulf %148, %144 : vector<8x128xf32>
    %cst_84 = arith.constant 1.42141378 : f32
    %150 = vector.broadcast %cst_84 : f32 to vector<8x128xf32>
    %151 = arith.addf %149, %150 : vector<8x128xf32>
    %152 = arith.mulf %151, %144 : vector<8x128xf32>
    %cst_85 = arith.constant -0.284496725 : f32
    %153 = vector.broadcast %cst_85 : f32 to vector<8x128xf32>
    %154 = arith.addf %152, %153 : vector<8x128xf32>
    %155 = arith.mulf %154, %144 : vector<8x128xf32>
    %cst_86 = arith.constant 0.254829586 : f32
    %156 = vector.broadcast %cst_86 : f32 to vector<8x128xf32>
    %157 = arith.addf %155, %156 : vector<8x128xf32>
    %158 = arith.mulf %157, %144 : vector<8x128xf32>
    %cst_87 = arith.constant 0.000000e+00 : f32
    %159 = vector.broadcast %cst_87 : f32 to vector<8x128xf32>
    %160 = arith.subf %159, %138 : vector<8x128xf32>
    %161 = arith.mulf %160, %138 : vector<8x128xf32>
    %162 = math.exp %161 : vector<8x128xf32>
    %163 = arith.mulf %158, %162 : vector<8x128xf32>
    %cst_88 = arith.constant 1.000000e+00 : f32
    %164 = vector.broadcast %cst_88 : f32 to vector<8x128xf32>
    %165 = arith.subf %164, %163 : vector<8x128xf32>
    %cst_89 = arith.constant 0.000000e+00 : f32
    %166 = vector.broadcast %cst_89 : f32 to vector<8x128xf32>
    %167 = arith.cmpf oge, %137, %166 : vector<8x128xf32>
    %cst_90 = arith.constant 0.000000e+00 : f32
    %168 = vector.broadcast %cst_90 : f32 to vector<8x128xf32>
    %169 = arith.subf %168, %165 : vector<8x128xf32>
    %170 = arith.select %167, %165, %169 : vector<8x128xi1>, vector<8x128xf32>
    %cst_91 = arith.constant 1.000000e+00 : f32
    %171 = vector.broadcast %cst_91 : f32 to vector<8x128xf32>
    %172 = arith.addf %171, %170 : vector<8x128xf32>
    %173 = arith.mulf %135, %172 : vector<8x128xf32>
    %174 = arith.truncf %173 : vector<8x128xf32> to vector<8x128xbf16>
    %c0_92 = arith.constant 0 : index
    %c0_93 = arith.constant 0 : index
    %175 = vector.load %arg16[%c0_92, %c0_93] : memref<128x32xbf16, #tpu.memory_space<vmem>>, vector<128x32xbf16>
    %cst_94 = arith.constant dense<0.000000e+00> : vector<8x32xf32>
    %176 = tpu.matmul %174, %175, %cst_94 {dimension_numbers = #tpu.dot_dimension_numbers<[1], [0], [0], [1], [0, 0, 1, 1], [], []>} : vector<8x128xbf16>, vector<128x32xbf16>, vector<8x32xf32> -> vector<8x32xf32>
    %c0_95 = arith.constant 0 : index
    %c0_96 = arith.constant 0 : index
    %177 = vector.load %arg17[%c0_95, %c0_96] : memref<1x32xf32, #tpu.memory_space<vmem>>, vector<1x32xf32>
    %178 = vector.broadcast %177 : vector<1x32xf32> to vector<8x32xf32>
    %179 = arith.addf %176, %178 : vector<8x32xf32>
    %180 = arith.addf %103, %179 : vector<8x32xf32>
    %c0_97 = arith.constant 0 : index
    %c0_98 = arith.constant 0 : index
    %c0_99 = arith.constant 0 : index
    %181 = vector.load %arg18[%c0_97, %c0_98, %c0_99] : memref<1x8x32xf32, #tpu.memory_space<vmem>>, vector<1x8x32xf32>
    %182 = vector.shape_cast %181 : vector<1x8x32xf32> to vector<8x32xf32>
    %183 = vector.shape_cast %180 : vector<8x32xf32> to vector<1x8x32xf32>
    tpu.vector_store %arg18[%c0_97, %c0_98, %c0_99], %183 {strides = array<i32>} : memref<1x8x32xf32, #tpu.memory_space<vmem>>, vector<1x8x32xf32>,
    %184 = vector.extract_strided_slice %180 {offsets = [0, 0], sizes = [1, 32], strides = [1, 1]} : vector<8x32xf32> to vector<1x32xf32>
    %c0_100 = arith.constant 0 : index
    %c0_101 = arith.constant 0 : index
    %c0_102 = arith.constant 0 : index
    %185 = vector.load %arg19[%c0_100, %c0_101, %c0_102] : memref<1x1x32xf32, #tpu.memory_space<vmem>>, vector<1x1x32xf32>
    %186 = vector.shape_cast %185 : vector<1x1x32xf32> to vector<1x32xf32>
    %187 = vector.shape_cast %184 : vector<1x32xf32> to vector<1x1x32xf32>
    tpu.vector_store %arg19[%c0_100, %c0_101, %c0_102], %187 {strides = array<i32>} : memref<1x1x32xf32, #tpu.memory_space<vmem>>, vector<1x1x32xf32>,
    return
  }
  func.func @transform_0(%arg0: i32) -> (i32, i32, i32) {
    %c0_i32 = arith.constant 0 : i32
    %c0_i32_0 = arith.constant 0 : i32
    %c0_i32_1 = arith.constant 0 : i32
    return %arg0, %c0_i32, %c0_i32_0 : i32, i32, i32
  }
  func.func @transform_1(%arg0: i32) -> (i32, i32) {
    %c0_i32 = arith.constant 0 : i32
    %c0_i32_0 = arith.constant 0 : i32
    %c0_i32_1 = arith.constant 0 : i32
    return %c0_i32, %c0_i32_0 : i32, i32
  }
  func.func @transform_2(%arg0: i32) -> (i32, i32) {
    %c0_i32 = arith.constant 0 : i32
    %c0_i32_0 = arith.constant 0 : i32
    %c0_i32_1 = arith.constant 0 : i32
    return %c0_i32, %c0_i32_0 : i32, i32
  }
  func.func @transform_3(%arg0: i32) -> (i32, i32) {
    %c0_i32 = arith.constant 0 : i32
    %c0_i32_0 = arith.constant 0 : i32
    %c0_i32_1 = arith.constant 0 : i32
    return %c0_i32, %c0_i32_0 : i32, i32
  }
  func.func @transform_4(%arg0: i32) -> (i32, i32) {
    %c0_i32 = arith.constant 0 : i32
    %c0_i32_0 = arith.constant 0 : i32
    %c0_i32_1 = arith.constant 0 : i32
    return %c0_i32, %c0_i32_0 : i32, i32
  }
  func.func @transform_5(%arg0: i32) -> (i32, i32) {
    %c0_i32 = arith.constant 0 : i32
    %c0_i32_0 = arith.constant 0 : i32
    %c0_i32_1 = arith.constant 0 : i32
    return %c0_i32, %c0_i32_0 : i32, i32
  }
  func.func @transform_6(%arg0: i32) -> (i32, i32) {
    %c0_i32 = arith.constant 0 : i32
    %c0_i32_0 = arith.constant 0 : i32
    %c0_i32_1 = arith.constant 0 : i32
    return %c0_i32, %c0_i32_0 : i32, i32
  }
  func.func @transform_7(%arg0: i32) -> (i32, i32) {
    %c0_i32 = arith.constant 0 : i32
    %c0_i32_0 = arith.constant 0 : i32
    %c0_i32_1 = arith.constant 0 : i32
    return %c0_i32, %c0_i32_0 : i32, i32
  }
  func.func @transform_8(%arg0: i32) -> (i32, i32) {
    %c0_i32 = arith.constant 0 : i32
    %c0_i32_0 = arith.constant 0 : i32
    %c0_i32_1 = arith.constant 0 : i32
    return %c0_i32, %c0_i32_0 : i32, i32
  }
  func.func @transform_9(%arg0: i32) -> (i32, i32) {
    %c0_i32 = arith.constant 0 : i32
    %c0_i32_0 = arith.constant 0 : i32
    %c0_i32_1 = arith.constant 0 : i32
    return %c0_i32, %c0_i32_0 : i32, i32
  }
  func.func @transform_10(%arg0: i32) -> (i32, i32) {
    %c0_i32 = arith.constant 0 : i32
    %c0_i32_0 = arith.constant 0 : i32
    %c0_i32_1 = arith.constant 0 : i32
    return %c0_i32, %c0_i32_0 : i32, i32
  }
  func.func @transform_11(%arg0: i32) -> (i32, i32) {
    %c0_i32 = arith.constant 0 : i32
    %c0_i32_0 = arith.constant 0 : i32
    %c0_i32_1 = arith.constant 0 : i32
    return %c0_i32, %c0_i32_0 : i32, i32
  }
  func.func @transform_12(%arg0: i32) -> (i32, i32) {
    %c0_i32 = arith.constant 0 : i32
    %c0_i32_0 = arith.constant 0 : i32
    %c0_i32_1 = arith.constant 0 : i32
    return %c0_i32, %c0_i32_0 : i32, i32
  }
  func.func @transform_13(%arg0: i32) -> (i32, i32) {
    %c0_i32 = arith.constant 0 : i32
    %c0_i32_0 = arith.constant 0 : i32
    %c0_i32_1 = arith.constant 0 : i32
    return %c0_i32, %c0_i32_0 : i32, i32
  }
  func.func @transform_14(%arg0: i32) -> (i32, i32) {
    %c0_i32 = arith.constant 0 : i32
    %c0_i32_0 = arith.constant 0 : i32
    %c0_i32_1 = arith.constant 0 : i32
    return %c0_i32, %c0_i32_0 : i32, i32
  }
  func.func @transform_15(%arg0: i32) -> (i32, i32) {
    %c0_i32 = arith.constant 0 : i32
    %c0_i32_0 = arith.constant 0 : i32
    %c0_i32_1 = arith.constant 0 : i32
    return %c0_i32, %c0_i32_0 : i32, i32
  }
  func.func @transform_16(%arg0: i32) -> (i32, i32) {
    %c0_i32 = arith.constant 0 : i32
    %c0_i32_0 = arith.constant 0 : i32
    %c0_i32_1 = arith.constant 0 : i32
    return %c0_i32, %c0_i32_0 : i32, i32
  }
  func.func @transform_17(%arg0: i32) -> (i32, i32, i32) {
    %c0_i32 = arith.constant 0 : i32
    %c0_i32_0 = arith.constant 0 : i32
    %c0_i32_1 = arith.constant 0 : i32
    return %arg0, %c0_i32, %c0_i32_0 : i32, i32, i32
  }
  func.func @transform_18(%arg0: i32) -> (i32, i32, i32) {
    %c0_i32 = arith.constant 0 : i32
    %c0_i32_0 = arith.constant 0 : i32
    %c0_i32_1 = arith.constant 0 : i32
    return %arg0, %c0_i32, %c0_i32_0 : i32, i32, i32
  }
}

</mosaic_0001>

<llo_original>
// kernel: tpu_custom_call.1
$region0: #{tpu_custom_call.1}
  #allocation0 [shape = 'u32[]', space=smem, size = 0x4, offset = 0x4, fixed_abs, tag = 'smem constant byte address 0x4 - core index']
  #allocation1 [shape = 'u32[72,128]{1,0:T(1,128)}', space=vmem, size = 0x9000, scoped, tag = 'internal scratch']
  #allocation2 [shape = 'bf16[4,8,8]{2,1,0:T(8,128)(2,1)}', space=vmem, size = 0x2000, scoped, tag = 'scratch operand']
  #allocation3 [shape = 'bf16[4,8,8]{2,1,0:T(8,128)(2,1)}', space=vmem, size = 0x2000, scoped, tag = 'scratch operand']
  #allocation4 [shape = 'bf16[4,8,8]{2,1,0:T(8,128)(2,1)}', space=vmem, size = 0x2000, scoped, tag = 'scratch operand']
  #allocation5 [shape = 'f32[4,8,8]{2,1,0:T(8,128)}', space=vmem, size = 0x4000, scoped, tag = 'scratch operand']
  %s0 = inlined_call_operand.vmem [shape: f32[2,8,32], index: 0, kind: input, shape index: {}]
  %s1 = inlined_call_operand.hbm [shape: f32[1,32], index: 1, kind: input, shape index: {}]
  %s2 = inlined_call_operand.vmem [shape: f32[1,32], index: 2, kind: input, shape index: {}]
  %s3 = inlined_call_operand.vmem [shape: bf16[32,32], index: 3, kind: input, shape index: {}]
  %s4 = inlined_call_operand.vmem [shape: f32[1,32], index: 4, kind: input, shape index: {}]
  %s5 = inlined_call_operand.vmem [shape: bf16[32,32], index: 5, kind: input, shape index: {}]
  %s6 = inlined_call_operand.vmem [shape: f32[1,32], index: 6, kind: input, shape index: {}]
  %s7 = inlined_call_operand.vmem [shape: bf16[32,32], index: 7, kind: input, shape index: {}]
  %s8 = inlined_call_operand.vmem [shape: f32[1,32], index: 8, kind: input, shape index: {}]
  %s9 = inlined_call_operand.vmem [shape: bf16[32,32], index: 9, kind: input, shape index: {}]
  %s10 = inlined_call_operand.vmem [shape: f32[1,32], index: 10, kind: input, shape index: {}]
  %s11 = inlined_call_operand.vmem [shape: f32[1,32], index: 11, kind: input, shape index: {}]
  %s12 = inlined_call_operand.vmem [shape: f32[1,32], index: 12, kind: input, shape index: {}]
  %s13 = inlined_call_operand.hbm [shape: bf16[32,128], index: 13, kind: input, shape index: {}]
  %s14 = inlined_call_operand.vmem [shape: f32[1,128], index: 14, kind: input, shape index: {}]
  %s15 = inlined_call_operand.vmem [shape: bf16[128,32], index: 15, kind: input, shape index: {}]
  %s16 = inlined_call_operand.vmem [shape: f32[1,32], index: 16, kind: input, shape index: {}]
  %s17 = inlined_call_operand.hbm [shape: f32[2,8,32], index: 17, kind: output, shape index: {0}]
  %s18 = inlined_call_operand.hbm [shape: f32[2,1,32], index: 18, kind: output, shape index: {1}]
  %19 = xla_tuple %s17, %s18
  %s20 = sld [smem:[#allocation0]]
  $region117: #{tpu_custom_call.1} parent=0
    _
  %s22 = ssub.s32 1, %s20
  %s23 = scalar_select 0, %s22, %s20
  $region1: #{tpu_custom_call.1} parent=0
    #allocation6 [shape = 'u8[512]{0}', space=vmem, size = 0x400, scoped, tag = 'input window, operand 1, single buffered']
    #allocation7 [shape = 's32[2]{0}', space=sflag, size = 0x8, scoped, tag = 'scoped memory for tpu_custom_call.1']
    #allocation8 [shape = 's32[2]{0}', space=sflag, size = 0x8, scoped, tag = 'scoped memory for tpu_custom_call.1']
    #allocation9 [shape = 'u8[8192]{0}', space=vmem, size = 0x2000, scoped, tag = 'input window, operand 13, single buffered']
    #allocation10 [shape = 's32[1]{0}', space=sflag, size = 0x4, scoped, tag = 'scoped memory for tpu_custom_call.1']
    #allocation11 [shape = 'u8[8192]{0}', space=vmem, size = 0x2000, scoped, tag = 'output window, operand 0']
    #allocation12 [shape = 'u8[1024]{0}', space=vmem, size = 0x400, scoped, tag = 'output window, operand 1']
    #allocation13 [shape = 's32[2]{0}', space=sflag, size = 0x8, scoped, tag = 'scoped memory for tpu_custom_call.1']
    %24 = vsyncpa [#allocation7], 0
    %25 = vsyncpa [#allocation10], 0
    %26 = vsyncpa [#allocation8], 0
    %s27 = scalar_lea.sflag [#allocation8], 1
    %28 = vsyncpa %s27, 0
    %29 = vsyncpa [#allocation13], 0
    %s30 = scalar_lea.sflag [#allocation13], 1
    %31 = vsyncpa %s30, 0
    loop: start=0, step=1, limit=4
    $region2: #{tpu_custom_call.1} parent=1 // loop_pre_header
      _
    $region3: #{tpu_custom_call.1} parent=1 // loop_header
      %s33 = sphi 0, %s37
      %p34 = scmp.ge.s32.totalorder %s33, 4
      %s43 = sphi 0, %s45
      %s46 = sphi 0, %s43
      %s47 = sphi 0, %s46
      %s63 = sphi 0, %s47
      %s67 = sphi 0, %s67
      %s69 = sphi 0, %s67
      %s70 = sphi 0, %s69
      %s84 = sphi 0, %s70
      %s88 = sphi 0, %s88
      %s90 = sphi 0, %s88
      %s91 = sphi 0, %s90
      %s105 = sphi 0, %s91
      %s109 = sphi 0, %s109
      %s111 = sphi 0, %s109
      %s112 = sphi 0, %s111
      %s126 = sphi 0, %s112
      %s130 = sphi 0, %s130
      %s132 = sphi 0, %s130
      %s133 = sphi 0, %s132
      %s147 = sphi 0, %s133
      %s151 = sphi 0, %s151
      %s153 = sphi 0, %s151
      %s154 = sphi 0, %s153
      %s168 = sphi 0, %s154
      %s172 = sphi 0, %s172
      %s174 = sphi 0, %s172
      %s175 = sphi 0, %s174
      %s189 = sphi 0, %s175
      %s193 = sphi 0, %s193
      %s195 = sphi 0, %s193
      %s196 = sphi 0, %s195
      %s210 = sphi 0, %s196
      %s214 = sphi 0, %s214
      %s216 = sphi 0, %s214
      %s217 = sphi 0, %s216
      %s231 = sphi 0, %s217
      %s235 = sphi 0, %s235
      %s237 = sphi 0, %s235
      %s238 = sphi 0, %s237
      %s252 = sphi 0, %s238
      %s256 = sphi 0, %s256
      %s258 = sphi 0, %s256
      %s259 = sphi 0, %s258
      %s273 = sphi 0, %s259
      %s277 = sphi 0, %s277
      %s279 = sphi 0, %s277
      %s280 = sphi 0, %s279
      %s294 = sphi 0, %s280
      %s298 = sphi 0, %s298
      %s300 = sphi 0, %s298
      %s301 = sphi 0, %s300
      %s315 = sphi 0, %s301
      %s319 = sphi 0, %s319
      %s321 = sphi 0, %s319
      %s322 = sphi 0, %s321
      %s336 = sphi 0, %s322
      %s340 = sphi 0, %s340
      %s342 = sphi 0, %s340
      %s343 = sphi 0, %s342
      %s357 = sphi 0, %s343
      %s361 = sphi 0, %s361
      %s363 = sphi 0, %s361
      %s364 = sphi 0, %s363
      %s378 = sphi 0, %s364
      %s382 = sphi 0, %s382
      %s384 = sphi 0, %s382
      %s385 = sphi 0, %s384
      %s399 = sphi 0, %s385
      %s405 = sphi 0, %s407
      %s408 = sphi 0, %s405
      %s409 = sphi 0, %s408
      %s425 = sphi 0, %s409
      %s431 = sphi 0, %s433
      %s434 = sphi 0, %s431
      %s435 = sphi 0, %s434
      %s451 = sphi 0, %s435
    $region4: #{tpu_custom_call.1} parent=1 // loop_header_branch
      %36 = sbr.rel (%p34) target = $region8
    $region5: #{tpu_custom_call.1} parent=1 // loop_body
      %s38 = ssub.s32 %s33, 1
      %s39 = ssub.s32 %s33, 2
      %s40 = sadd.s32 %s33, 1
      %s41 = ssub.s32 %s33, %s40
      %p42 = scmp.eq.s32.totalorder %s41, 0
      %s44 = sadd.s32 %s43, 1
      %s45 = scalar_select %p42, %s43, %s44
      %p48 = pneg %p42
      %p49 = scmp.eq.s32.totalorder %s33, 1
      %p50 = por %p48, %p49
      %p51 = scmp.ne.s32.totalorder %s43, %s46
      %p52 = scmp.eq.s32.totalorder %s33, 0
      %p53 = por %p51, %p52
      %p54 = scmp.ne.s32.totalorder %s43, %s46
      %p55 = scmp.eq.s32.totalorder %s38, 1
      %p56 = por %p54, %p55
      %p57 = scmp.ne.s32.totalorder %s46, %s47
      %p58 = scmp.eq.s32.totalorder %s38, 0
      %p59 = por %p57, %p58
      %p60 = scmp.ne.s32.totalorder %s46, %s47
      %p61 = scmp.eq.s32.totalorder %s39, 1
      %p62 = por %p60, %p61
      %p64 = scmp.ne.s32.totalorder %s47, %s63
      %p65 = scmp.eq.s32.totalorder %s39, 0
      %p66 = por %p64, %p65
      %s68 = sadd.s32 %s67, 1
      %p71 = scmp.eq.s32.totalorder %s33, 1
      %p72 = scmp.ne.s32.totalorder %s67, %s69
      %p73 = scmp.eq.s32.totalorder %s33, 0
      %p74 = por %p72, %p73
      %p75 = scmp.ne.s32.totalorder %s67, %s69
      %p76 = scmp.eq.s32.totalorder %s38, 1
      %p77 = por %p75, %p76
      %p78 = scmp.ne.s32.totalorder %s69, %s70
      %p79 = scmp.eq.s32.totalorder %s38, 0
      %p80 = por %p78, %p79
      %p81 = scmp.ne.s32.totalorder %s69, %s70
      %p82 = scmp.eq.s32.totalorder %s39, 1
      %p83 = por %p81, %p82
      %p85 = scmp.ne.s32.totalorder %s70, %s84
      %p86 = scmp.eq.s32.totalorder %s39, 0
      %p87 = por %p85, %p86
      %s89 = sadd.s32 %s88, 1
      %p92 = scmp.eq.s32.totalorder %s33, 1
      %p93 = scmp.ne.s32.totalorder %s88, %s90
      %p94 = scmp.eq.s32.totalorder %s33, 0
      %p95 = por %p93, %p94
      %p96 = scmp.ne.s32.totalorder %s88, %s90
      %p97 = scmp.eq.s32.totalorder %s38, 1
      %p98 = por %p96, %p97
      %p99 = scmp.ne.s32.totalorder %s90, %s91
      %p100 = scmp.eq.s32.totalorder %s38, 0
      %p101 = por %p99, %p100
      %p102 = scmp.ne.s32.totalorder %s90, %s91
      %p103 = scmp.eq.s32.totalorder %s39, 1
      %p104 = por %p102, %p103
      %p106 = scmp.ne.s32.totalorder %s91, %s105
      %p107 = scmp.eq.s32.totalorder %s39, 0
      %p108 = por %p106, %p107
      %s110 = sadd.s32 %s109, 1
      %p113 = scmp.eq.s32.totalorder %s33, 1
      %p114 = scmp.ne.s32.totalorder %s109, %s111
      %p115 = scmp.eq.s32.totalorder %s33, 0
      %p116 = por %p114, %p115
      %p117 = scmp.ne.s32.totalorder %s109, %s111
      %p118 = scmp.eq.s32.totalorder %s38, 1
      %p119 = por %p117, %p118
      %p120 = scmp.ne.s32.totalorder %s111, %s112
      %p121 = scmp.eq.s32.totalorder %s38, 0
      %p122 = por %p120, %p121
      %p123 = scmp.ne.s32.totalorder %s111, %s112
      %p124 = scmp.eq.s32.totalorder %s39, 1
      %p125 = por %p123, %p124
      %p127 = scmp.ne.s32.totalorder %s112, %s126
      %p128 = scmp.eq.s32.totalorder %s39, 0
      %p129 = por %p127, %p128
      %s131 = sadd.s32 %s130, 1
      %p134 = scmp.eq.s32.totalorder %s33, 1
      %p135 = scmp.ne.s32.totalorder %s130, %s132
      %p136 = scmp.eq.s32.totalorder %s33, 0
      %p137 = por %p135, %p136
      %p138 = scmp.ne.s32.totalorder %s130, %s132
      %p139 = scmp.eq.s32.totalorder %s38, 1
      %p140 = por %p138, %p139
      %p141 = scmp.ne.s32.totalorder %s132, %s133
      %p142 = scmp.eq.s32.totalorder %s38, 0
      %p143 = por %p141, %p142
      %p144 = scmp.ne.s32.totalorder %s132, %s133
      %p145 = scmp.eq.s32.totalorder %s39, 1
      %p146 = por %p144, %p145
      %p148 = scmp.ne.s32.totalorder %s133, %s147
      %p149 = scmp.eq.s32.totalorder %s39, 0
      %p150 = por %p148, %p149
      %s152 = sadd.s32 %s151, 1
      %p155 = scmp.eq.s32.totalorder %s33, 1
      %p156 = scmp.ne.s32.totalorder %s151, %s153
      %p157 = scmp.eq.s32.totalorder %s33, 0
      %p158 = por %p156, %p157
      %p159 = scmp.ne.s32.totalorder %s151, %s153
      %p160 = scmp.eq.s32.totalorder %s38, 1
      %p161 = por %p159, %p160
      %p162 = scmp.ne.s32.totalorder %s153, %s154
      %p163 = scmp.eq.s32.totalorder %s38, 0
      %p164 = por %p162, %p163
      %p165 = scmp.ne.s32.totalorder %s153, %s154
      %p166 = scmp.eq.s32.totalorder %s39, 1
      %p167 = por %p165, %p166
      %p169 = scmp.ne.s32.totalorder %s154, %s168
      %p170 = scmp.eq.s32.totalorder %s39, 0
      %p171 = por %p169, %p170
      %s173 = sadd.s32 %s172, 1
      %p176 = scmp.eq.s32.totalorder %s33, 1
      %p177 = scmp.ne.s32.totalorder %s172, %s174
      %p178 = scmp.eq.s32.totalorder %s33, 0
      %p179 = por %p177, %p178
      %p180 = scmp.ne.s32.totalorder %s172, %s174
      %p181 = scmp.eq.s32.totalorder %s38, 1
      %p182 = por %p180, %p181
      %p183 = scmp.ne.s32.totalorder %s174, %s175
      %p184 = scmp.eq.s32.totalorder %s38, 0
      %p185 = por %p183, %p184
      %p186 = scmp.ne.s32.totalorder %s174, %s175
      %p187 = scmp.eq.s32.totalorder %s39, 1
      %p188 = por %p186, %p187
      %p190 = scmp.ne.s32.totalorder %s175, %s189
      %p191 = scmp.eq.s32.totalorder %s39, 0
      %p192 = por %p190, %p191
      %s194 = sadd.s32 %s193, 1
      %p197 = scmp.eq.s32.totalorder %s33, 1
      %p198 = scmp.ne.s32.totalorder %s193, %s195
      %p199 = scmp.eq.s32.totalorder %s33, 0
      %p200 = por %p198, %p199
      %p201 = scmp.ne.s32.totalorder %s193, %s195
      %p202 = scmp.eq.s32.totalorder %s38, 1
      %p203 = por %p201, %p202
      %p204 = scmp.ne.s32.totalorder %s195, %s196
      %p205 = scmp.eq.s32.totalorder %s38, 0
      %p206 = por %p204, %p205
      %p207 = scmp.ne.s32.totalorder %s195, %s196
      %p208 = scmp.eq.s32.totalorder %s39, 1
      %p209 = por %p207, %p208
      %p211 = scmp.ne.s32.totalorder %s196, %s210
      %p212 = scmp.eq.s32.totalorder %s39, 0
      %p213 = por %p211, %p212
      %s215 = sadd.s32 %s214, 1
      %p218 = scmp.eq.s32.totalorder %s33, 1
      %p219 = scmp.ne.s32.totalorder %s214, %s216
      %p220 = scmp.eq.s32.totalorder %s33, 0
      %p221 = por %p219, %p220
      %p222 = scmp.ne.s32.totalorder %s214, %s216
      %p223 = scmp.eq.s32.totalorder %s38, 1
      %p224 = por %p222, %p223
      %p225 = scmp.ne.s32.totalorder %s216, %s217
      %p226 = scmp.eq.s32.totalorder %s38, 0
      %p227 = por %p225, %p226
      %p228 = scmp.ne.s32.totalorder %s216, %s217
      %p229 = scmp.eq.s32.totalorder %s39, 1
      %p230 = por %p228, %p229
      %p232 = scmp.ne.s32.totalorder %s217, %s231
      %p233 = scmp.eq.s32.totalorder %s39, 0
      %p234 = por %p232, %p233
      %s236 = sadd.s32 %s235, 1
      %p239 = scmp.eq.s32.totalorder %s33, 1
      %p240 = scmp.ne.s32.totalorder %s235, %s237
      %p241 = scmp.eq.s32.totalorder %s33, 0
      %p242 = por %p240, %p241
      %p243 = scmp.ne.s32.totalorder %s235, %s237
      %p244 = scmp.eq.s32.totalorder %s38, 1
      %p245 = por %p243, %p244
      %p246 = scmp.ne.s32.totalorder %s237, %s238
      %p247 = scmp.eq.s32.totalorder %s38, 0
      %p248 = por %p246, %p247
      %p249 = scmp.ne.s32.totalorder %s237, %s238
      %p250 = scmp.eq.s32.totalorder %s39, 1
      %p251 = por %p249, %p250
      %p253 = scmp.ne.s32.totalorder %s238, %s252
      %p254 = scmp.eq.s32.totalorder %s39, 0
      %p255 = por %p253, %p254
      %s257 = sadd.s32 %s256, 1
      %p260 = scmp.eq.s32.totalorder %s33, 1
      %p261 = scmp.ne.s32.totalorder %s256, %s258
      %p262 = scmp.eq.s32.totalorder %s33, 0
      %p263 = por %p261, %p262
      %p264 = scmp.ne.s32.totalorder %s256, %s258
      %p265 = scmp.eq.s32.totalorder %s38, 1
      %p266 = por %p264, %p265
      %p267 = scmp.ne.s32.totalorder %s258, %s259
      %p268 = scmp.eq.s32.totalorder %s38, 0
      %p269 = por %p267, %p268
      %p270 = scmp.ne.s32.totalorder %s258, %s259
      %p271 = scmp.eq.s32.totalorder %s39, 1
      %p272 = por %p270, %p271
      %p274 = scmp.ne.s32.totalorder %s259, %s273
      %p275 = scmp.eq.s32.totalorder %s39, 0
      %p276 = por %p274, %p275
      %s278 = sadd.s32 %s277, 1
      %p281 = scmp.eq.s32.totalorder %s33, 1
      %p282 = scmp.ne.s32.totalorder %s277, %s279
      %p283 = scmp.eq.s32.totalorder %s33, 0
      %p284 = por %p282, %p283
      %p285 = scmp.ne.s32.totalorder %s277, %s279
      %p286 = scmp.eq.s32.totalorder %s38, 1
      %p287 = por %p285, %p286
      %p288 = scmp.ne.s32.totalorder %s279, %s280
      %p289 = scmp.eq.s32.totalorder %s38, 0
      %p290 = por %p288, %p289
      %p291 = scmp.ne.s32.totalorder %s279, %s280
      %p292 = scmp.eq.s32.totalorder %s39, 1
      %p293 = por %p291, %p292
      %p295 = scmp.ne.s32.totalorder %s280, %s294
      %p296 = scmp.eq.s32.totalorder %s39, 0
      %p297 = por %p295, %p296
      %s299 = sadd.s32 %s298, 1
      %p302 = scmp.eq.s32.totalorder %s33, 1
      %p303 = scmp.ne.s32.totalorder %s298, %s300
      %p304 = scmp.eq.s32.totalorder %s33, 0
      %p305 = por %p303, %p304
      %p306 = scmp.ne.s32.totalorder %s298, %s300
      %p307 = scmp.eq.s32.totalorder %s38, 1
      %p308 = por %p306, %p307
      %p309 = scmp.ne.s32.totalorder %s300, %s301
      %p310 = scmp.eq.s32.totalorder %s38, 0
      %p311 = por %p309, %p310
      %p312 = scmp.ne.s32.totalorder %s300, %s301
      %p313 = scmp.eq.s32.totalorder %s39, 1
      %p314 = por %p312, %p313
      %p316 = scmp.ne.s32.totalorder %s301, %s315
      %p317 = scmp.eq.s32.totalorder %s39, 0
      %p318 = por %p316, %p317
      %s320 = sadd.s32 %s319, 1
      %p323 = scmp.eq.s32.totalorder %s33, 1
      %p324 = scmp.ne.s32.totalorder %s319, %s321
      %p325 = scmp.eq.s32.totalorder %s33, 0
      %p326 = por %p324, %p325
      %p327 = scmp.ne.s32.totalorder %s319, %s321
      %p328 = scmp.eq.s32.totalorder %s38, 1
      %p329 = por %p327, %p328
      %p330 = scmp.ne.s32.totalorder %s321, %s322
      %p331 = scmp.eq.s32.totalorder %s38, 0
      %p332 = por %p330, %p331
      %p333 = scmp.ne.s32.totalorder %s321, %s322
      %p334 = scmp.eq.s32.totalorder %s39, 1
      %p335 = por %p333, %p334
      %p337 = scmp.ne.s32.totalorder %s322, %s336
      %p338 = scmp.eq.s32.totalorder %s39, 0
      %p339 = por %p337, %p338
      %s341 = sadd.s32 %s340, 1
      %p344 = scmp.eq.s32.totalorder %s33, 1
      %p345 = scmp.ne.s32.totalorder %s340, %s342
      %p346 = scmp.eq.s32.totalorder %s33, 0
      %p347 = por %p345, %p346
      %p348 = scmp.ne.s32.totalorder %s340, %s342
      %p349 = scmp.eq.s32.totalorder %s38, 1
      %p350 = por %p348, %p349
      %p351 = scmp.ne.s32.totalorder %s342, %s343
      %p352 = scmp.eq.s32.totalorder %s38, 0
      %p353 = por %p351, %p352
      %p354 = scmp.ne.s32.totalorder %s342, %s343
      %p355 = scmp.eq.s32.totalorder %s39, 1
      %p356 = por %p354, %p355
      %p358 = scmp.ne.s32.totalorder %s343, %s357
      %p359 = scmp.eq.s32.totalorder %s39, 0
      %p360 = por %p358, %p359
      %s362 = sadd.s32 %s361, 1
      %p365 = scmp.eq.s32.totalorder %s33, 1
      %p366 = scmp.ne.s32.totalorder %s361, %s363
      %p367 = scmp.eq.s32.totalorder %s33, 0
      %p368 = por %p366, %p367
      %p369 = scmp.ne.s32.totalorder %s361, %s363
      %p370 = scmp.eq.s32.totalorder %s38, 1
      %p371 = por %p369, %p370
      %p372 = scmp.ne.s32.totalorder %s363, %s364
      %p373 = scmp.eq.s32.totalorder %s38, 0
      %p374 = por %p372, %p373
      %p375 = scmp.ne.s32.totalorder %s363, %s364
      %p376 = scmp.eq.s32.totalorder %s39, 1
      %p377 = por %p375, %p376
      %p379 = scmp.ne.s32.totalorder %s364, %s378
      %p380 = scmp.eq.s32.totalorder %s39, 0
      %p381 = por %p379, %p380
      %s383 = sadd.s32 %s382, 1
      %p386 = scmp.eq.s32.totalorder %s33, 1
      %p387 = scmp.ne.s32.totalorder %s382, %s384
      %p388 = scmp.eq.s32.totalorder %s33, 0
      %p389 = por %p387, %p388
      %p390 = scmp.ne.s32.totalorder %s382, %s384
      %p391 = scmp.eq.s32.totalorder %s38, 1
      %p392 = por %p390, %p391
      %p393 = scmp.ne.s32.totalorder %s384, %s385
      %p394 = scmp.eq.s32.totalorder %s38, 0
      %p395 = por %p393, %p394
      %p396 = scmp.ne.s32.totalorder %s384, %s385
      %p397 = scmp.eq.s32.totalorder %s39, 1
      %p398 = por %p396, %p397
      %p400 = scmp.ne.s32.totalorder %s385, %s399
      %p401 = scmp.eq.s32.totalorder %s39, 0
      %p402 = por %p400, %p401
      %s403 = ssub.s32 %s33, %s40
      %p404 = scmp.eq.s32.totalorder %s403, 0
      %s406 = sadd.s32 %s405, 1
      %s407 = scalar_select %p404, %s405, %s406
      %p410 = pneg %p404
      %p411 = scmp.eq.s32.totalorder %s33, 1
      %p412 = por %p410, %p411
      %p413 = scmp.ne.s32.totalorder %s405, %s408
      %p414 = scmp.eq.s32.totalorder %s33, 0
      %p415 = por %p413, %p414
      %p416 = scmp.ne.s32.totalorder %s405, %s408
      %p417 = scmp.eq.s32.totalorder %s38, 1
      %p418 = por %p416, %p417
      %p419 = scmp.ne.s32.totalorder %s408, %s409
      %p420 = scmp.eq.s32.totalorder %s38, 0
      %p421 = por %p419, %p420
      %p422 = scmp.ne.s32.totalorder %s408, %s409
      %p423 = scmp.eq.s32.totalorder %s39, 1
      %p424 = por %p422, %p423
      %p426 = scmp.ne.s32.totalorder %s409, %s425
      %p427 = scmp.eq.s32.totalorder %s39, 0
      %p428 = por %p426, %p427
      %s429 = ssub.s32 %s33, %s40
      %p430 = scmp.eq.s32.totalorder %s429, 0
      %s432 = sadd.s32 %s431, 1
      %s433 = scalar_select %p430, %s431, %s432
      %p436 = pneg %p430
      %p437 = scmp.eq.s32.totalorder %s33, 1
      %p438 = por %p436, %p437
      %p439 = scmp.ne.s32.totalorder %s431, %s434
      %p440 = scmp.eq.s32.totalorder %s33, 0
      %p441 = por %p439, %p440
      %p442 = scmp.ne.s32.totalorder %s431, %s434
      %p443 = scmp.eq.s32.totalorder %s38, 1
      %p444 = por %p442, %p443
      %p445 = scmp.ne.s32.totalorder %s434, %s435
      %p446 = scmp.eq.s32.totalorder %s38, 0
      %p447 = por %p445, %p446
      %p448 = scmp.ne.s32.totalorder %s434, %s435
      %p449 = scmp.eq.s32.totalorder %s39, 1
      %p450 = por %p448, %p449
      %p452 = scmp.ne.s32.totalorder %s435, %s451
      %p453 = scmp.eq.s32.totalorder %s39, 0
      %p454 = por %p452, %p453
      %p455 = scmp.le.s32.totalorder 1, %s33
      %p456 = scmp.lt.s32.totalorder %s33, 3
      %p457 = pnand %p455, %p456
      %p458 = pneg %p457
      // Predicated region
      $region9: #{tpu_custom_call.1} parent=5 // pred_check
        _
      $region10: #{tpu_custom_call.1} parent=5 // pred_check_branch
        %460 = sbr.rel (%p457) target = $region12
      $region11: #{tpu_custom_call.1} parent=5 // pred_region
        %s461 = ssub.s32 %s33, 1
        // Predicated region
        $region13: #{tpu_custom_call.1} parent=11 // pred_check
          %p462 = pneg %p80
        $region14: #{tpu_custom_call.1} parent=11 // pred_check_branch
          %464 = sbr.rel (%p462) target = $region16
        $region15: #{tpu_custom_call.1} parent=11 // pred_region
          %466 = vsyncadd [#allocation7], 0
          %s468 = sshll.u32 %s1, 4
          %s469 = int_to_ptr.hbm [resolvable:$true] %s468
          %s470 = sshll.u32 [#allocation6], 4
          %s471 = int_to_ptr.vmem [resolvable:$true] %s470
          %473 = dma.hbm_to_vmem [thread:$0]  %s469, 16, %s471, [#allocation7]
        $region16: #{tpu_custom_call.1} parent=11 // pred_fallthru
          _
        // Predicated region
        $region17: #{tpu_custom_call.1} parent=11 // pred_check
          %p474 = pneg %p101
        $region18: #{tpu_custom_call.1} parent=11 // pred_check_branch
          %476 = sbr.rel (%p474) target = $region20
        $region19: #{tpu_custom_call.1} parent=11 // pred_region
          _
        $region20: #{tpu_custom_call.1} parent=11 // pred_fallthru
          _
        // Predicated region
        $region21: #{tpu_custom_call.1} parent=11 // pred_check
          %p477 = pneg %p122
        $region22: #{tpu_custom_call.1} parent=11 // pred_check_branch
          %479 = sbr.rel (%p477) target = $region24
        $region23: #{tpu_custom_call.1} parent=11 // pred_region
          _
        $region24: #{tpu_custom_call.1} parent=11 // pred_fallthru
          _
        // Predicated region
        $region25: #{tpu_custom_call.1} parent=11 // pred_check
          %p480 = pneg %p143
        $region26: #{tpu_custom_call.1} parent=11 // pred_check_branch
          %482 = sbr.rel (%p480) target = $region28
        $region27: #{tpu_custom_call.1} parent=11 // pred_region
          _
        $region28: #{tpu_custom_call.1} parent=11 // pred_fallthru
          _
        // Predicated region
        $region29: #{tpu_custom_call.1} parent=11 // pred_check
          %p483 = pneg %p164
        $region30: #{tpu_custom_call.1} parent=11 // pred_check_branch
          %485 = sbr.rel (%p483) target = $region32
        $region31: #{tpu_custom_call.1} parent=11 // pred_region
          _
        $region32: #{tpu_custom_call.1} parent=11 // pred_fallthru
          _
        // Predicated region
        $region33: #{tpu_custom_call.1} parent=11 // pred_check
          %p486 = pneg %p185
        $region34: #{tpu_custom_call.1} parent=11 // pred_check_branch
          %488 = sbr.rel (%p486) target = $region36
        $region35: #{tpu_custom_call.1} parent=11 // pred_region
          _
        $region36: #{tpu_custom_call.1} parent=11 // pred_fallthru
          _
        // Predicated region
        $region37: #{tpu_custom_call.1} parent=11 // pred_check
          %p489 = pneg %p206
        $region38: #{tpu_custom_call.1} parent=11 // pred_check_branch
          %491 = sbr.rel (%p489) target = $region40
        $region39: #{tpu_custom_call.1} parent=11 // pred_region
          _
        $region40: #{tpu_custom_call.1} parent=11 // pred_fallthru
          _
        // Predicated region
        $region41: #{tpu_custom_call.1} parent=11 // pred_check
          %p492 = pneg %p227
        $region42: #{tpu_custom_call.1} parent=11 // pred_check_branch
          %494 = sbr.rel (%p492) target = $region44
        $region43: #{tpu_custom_call.1} parent=11 // pred_region
          _
        $region44: #{tpu_custom_call.1} parent=11 // pred_fallthru
          _
        // Predicated region
        $region45: #{tpu_custom_call.1} parent=11 // pred_check
          %p495 = pneg %p248
        $region46: #{tpu_custom_call.1} parent=11 // pred_check_branch
          %497 = sbr.rel (%p495) target = $region48
        $region47: #{tpu_custom_call.1} parent=11 // pred_region
          _
        $region48: #{tpu_custom_call.1} parent=11 // pred_fallthru
          _
        // Predicated region
        $region49: #{tpu_custom_call.1} parent=11 // pred_check
          %p498 = pneg %p269
        $region50: #{tpu_custom_call.1} parent=11 // pred_check_branch
          %500 = sbr.rel (%p498) target = $region52
        $region51: #{tpu_custom_call.1} parent=11 // pred_region
          _
        $region52: #{tpu_custom_call.1} parent=11 // pred_fallthru
          _
        // Predicated region
        $region53: #{tpu_custom_call.1} parent=11 // pred_check
          %p501 = pneg %p290
        $region54: #{tpu_custom_call.1} parent=11 // pred_check_branch
          %503 = sbr.rel (%p501) target = $region56
        $region55: #{tpu_custom_call.1} parent=11 // pred_region
          _
        $region56: #{tpu_custom_call.1} parent=11 // pred_fallthru
          _
        // Predicated region
        $region57: #{tpu_custom_call.1} parent=11 // pred_check
          %p504 = pneg %p311
        $region58: #{tpu_custom_call.1} parent=11 // pred_check_branch
          %506 = sbr.rel (%p504) target = $region60
        $region59: #{tpu_custom_call.1} parent=11 // pred_region
          _
        $region60: #{tpu_custom_call.1} parent=11 // pred_fallthru
          _
        // Predicated region
        $region61: #{tpu_custom_call.1} parent=11 // pred_check
          %p507 = pneg %p332
        $region62: #{tpu_custom_call.1} parent=11 // pred_check_branch
          %509 = sbr.rel (%p507) target = $region64
        $region63: #{tpu_custom_call.1} parent=11 // pred_region
          %511 = vsyncadd [#allocation10], 0
          %s512 = sshll.u32 %s13, 4
          %s513 = int_to_ptr.hbm [resolvable:$true] %s512
          %s514 = sshll.u32 [#allocation9], 4
          %s515 = int_to_ptr.vmem [resolvable:$true] %s514
          %520 = dma.hbm_to_vmem [thread:$0]  %s513, 256, %s515, [#allocation10], 64, 64, 4
        $region64: #{tpu_custom_call.1} parent=11 // pred_fallthru
          _
        // Predicated region
        $region65: #{tpu_custom_call.1} parent=11 // pred_check
          %p521 = pneg %p353
        $region66: #{tpu_custom_call.1} parent=11 // pred_check_branch
          %523 = sbr.rel (%p521) target = $region68
        $region67: #{tpu_custom_call.1} parent=11 // pred_region
          _
        $region68: #{tpu_custom_call.1} parent=11 // pred_fallthru
          _
        // Predicated region
        $region69: #{tpu_custom_call.1} parent=11 // pred_check
          %p524 = pneg %p374
        $region70: #{tpu_custom_call.1} parent=11 // pred_check_branch
          %526 = sbr.rel (%p524) target = $region72
        $region71: #{tpu_custom_call.1} parent=11 // pred_region
          _
        $region72: #{tpu_custom_call.1} parent=11 // pred_fallthru
          _
        // Predicated region
        $region73: #{tpu_custom_call.1} parent=11 // pred_check
          %p527 = pneg %p395
        $region74: #{tpu_custom_call.1} parent=11 // pred_check_branch
          %529 = sbr.rel (%p527) target = $region76
        $region75: #{tpu_custom_call.1} parent=11 // pred_region
          _
        $region76: #{tpu_custom_call.1} parent=11 // pred_fallthru
          _
      $region12: #{tpu_custom_call.1} parent=5 // pred_fallthru
        _
      %p530 = scmp.lt.s32.totalorder %s33, 2
      // Predicated region
      $region77: #{tpu_custom_call.1} parent=5 // pred_check
        %p531 = pneg %p530
      $region78: #{tpu_custom_call.1} parent=5 // pred_check_branch
        %533 = sbr.rel (%p531) target = $region80
      $region79: #{tpu_custom_call.1} parent=5 // pred_region
        // Predicated region
        $region81: #{tpu_custom_call.1} parent=79 // pred_check
          %p534 = pneg %p53
        $region82: #{tpu_custom_call.1} parent=79 // pred_check_branch
          %536 = sbr.rel (%p534) target = $region84
        $region83: #{tpu_custom_call.1} parent=79 // pred_region
          %p537 = scmp.lt.s32.totalorder %s33, 1
          %s538 = scalar_select %p537, %s33, 1
          %s539 = smul.addr %s538, 8
          %s540 = scalar_lea.vmem %s0, %s539
        $region84: #{tpu_custom_call.1} parent=79 // pred_fallthru
          _
      $region80: #{tpu_custom_call.1} parent=5 // pred_fallthru
        _
      %p541 = scmp.le.s32.totalorder 1, %s33
      %p542 = scmp.lt.s32.totalorder %s33, 3
      %p543 = pnand %p541, %p542
      %p544 = pneg %p543
      // Predicated region
      $region85: #{tpu_custom_call.1} parent=5 // pred_check
        _
      $region86: #{tpu_custom_call.1} parent=5 // pred_check_branch
        %546 = sbr.rel (%p543) target = $region88
      $region87: #{tpu_custom_call.1} parent=5 // pred_region
        %s547 = ssub.s32 %s33, 1
        // Predicated region
        $region89: #{tpu_custom_call.1} parent=87 // pred_check
          %p548 = pneg %p80
        $region90: #{tpu_custom_call.1} parent=87 // pred_check_branch
          %550 = sbr.rel (%p548) target = $region92
        $region91: #{tpu_custom_call.1} parent=87 // pred_region
          %552 = dma.done [#allocation7], 16
        $region92: #{tpu_custom_call.1} parent=87 // pred_fallthru
          _
        // Predicated region
        $region93: #{tpu_custom_call.1} parent=87 // pred_check
          %p553 = pneg %p332
        $region94: #{tpu_custom_call.1} parent=87 // pred_check_branch
          %555 = sbr.rel (%p553) target = $region96
        $region95: #{tpu_custom_call.1} parent=87 // pred_region
          %557 = dma.done [#allocation10], 256
        $region96: #{tpu_custom_call.1} parent=87 // pred_fallthru
          _
        %p558 = scmp.lt.s32.totalorder %s38, 1
        %s559 = scalar_select %p558, %s38, 1
        %s560 = smul.addr %s559, 8
        %s561 = scalar_lea.vmem %s0, %s560
        %p562 = pneg %p59
        %p563 = pneg %p56
        %p564 = pneg %p80
        %p565 = pneg %p77
        %p566 = pneg %p101
        %p567 = pneg %p98
        %p568 = pneg %p122
        %p569 = pneg %p119
        %p570 = pneg %p143
        %p571 = pneg %p140
        %p572 = pneg %p164
        %p573 = pneg %p161
        %p574 = pneg %p185
        %p575 = pneg %p182
        %p576 = pneg %p206
        %p577 = pneg %p203
        %p578 = pneg %p227
        %p579 = pneg %p224
        %p580 = pneg %p248
        %p581 = pneg %p245
        %p582 = pneg %p269
        %p583 = pneg %p266
        %p584 = pneg %p290
        %p585 = pneg %p287
        %p586 = pneg %p311
        %p587 = pneg %p308
        %p588 = pneg %p332
        %p589 = pneg %p329
        %p590 = pneg %p353
        %p591 = pneg %p350
        %p592 = pneg %p374
        %p593 = pneg %p371
        %p594 = pneg %p395
        %p595 = pneg %p392
        %p596 = pneg %p421
        %p597 = pneg %p418
        %s598 = sand.u32 %s408, 1
        %s599 = scalar_lea.sflag [#allocation8], %s598
        %s600 = sand.u32 %s408, 1
        %s601 = smul.addr %s600, 8
        %s602 = scalar_lea.vmem [#allocation11], %s601
        %p603 = pneg %p447
        %p604 = pneg %p444
        %s605 = sand.u32 %s434, 1
        %s606 = scalar_lea.sflag [#allocation13], %s605
        %s607 = sand.u32 %s434, 1
        %s608 = scalar_lea.vmem [#allocation12], %s607
        %p609 = scmp.lt.s32.totalorder %s38, 1
        %s610 = scalar_select %p609, %s38, 1
        %s611 = smul.addr %s610, 8
        %s612 = scalar_lea.vmem %s0, %s611
        %v614 = vld [vmem:[%s612] sm:$0xff]
        %v615 = vld [vmem:[#allocation6] sm:$0x1]
        %v616 = vld [vmem:[%s2] sm:$0x1]
        %vm617 = vcmask 261120
        %v618 = vsel %vm617, %v614, 0.0
        %619 = vadd.xlane.f32.xlu0 %v618
        %v620 = vpop.xlane.xlu0 %619
        %v621 = vrcp.pop 32.0
        %v622 = vmul.f32 32.0, %v621
        %v623 = vsub.f32 1.0, %v622
        %v624 = vmul.f32 %v621, %v623
        %v625 = vadd.f32 %v621, %v624
        %vm626 = vweird.f32 %v621
        %v627 = vsel %vm626, %v621, %v625
        %v628 = vmul.f32 %v620, %v627
        %v629 = vsub.f32 %v614, %v628
        %v630 = vmul.f32 %v629, %v629
        %v631 = vsel %vm617, %v630, 0.0
        %632 = vadd.xlane.f32.xlu0 %v631
        %v633 = vpop.xlane.xlu0 %632
        %v634 = vmul.f32 %v633, %v627
        %v635 = vadd.f32 %v634, 1e-05
        %v636 = vrsqrt.pop %v635
        %v637 = vmul.f32 %v636, %v635
        %v638 = vmul.f32 %v637, %v636
        %v639 = vmul.f32 0.5, %v638
        %v640 = vsub.f32 1.5, %v639
        %v641 = vmul.f32 %v636, %v640
        %vm642 = vweird.f32 %v635
        %vm643 = vweird.f32 %v636
        %vm644 = vmor %vm642, %vm643
        %v645 = vsel %vm644, %v636, %v641
        %v646 = vmul.f32 %v629, %v645
        %v648 = vperm.slane %v615, 0
        %v650 = vmul.f32 %v646, %v648
        %v652 = vperm.slane %v616, 0
        %v654 = vadd.f32 %v650, %v652
        %v655 = vpack.c.bf16 %v654, %v654
        %v656 = vld [vmem:[%s3] sm:$0xf]
        %v657 = vld [vmem:[%s3 + $0x4] sm:$0xf]
        %v658 = vld [vmem:[%s3 + $0x8] sm:$0xf]
        %v659 = vld [vmem:[%s3 + $0xc] sm:$0xf]
        %v660 = vld [vmem:[%s4] sm:$0x1]
        %v662 = vperm.slane %v660, 0
        %v668 = vunpack.c.l.b16 %v656
        %v669 = vunpack.c.l.b16 %v657
        %v670 = vunpack.c.l.b16 %v658
        %v671 = vunpack.c.l.b16 %v659
        %v672 = vpack.c.b16 %v669, %v668
        %v673 = vpack.c.b16 %v671, %v670
        %v677 = vsel %vm617, %v655, 0
        %679 = vmatpush.bf16.msra.mxu0 0
        %680 = vmatpush.bf16.msra.mxu0 0
        %681 = vmatpush.bf16.msra.mxu0 0
        %682 = vmatpush.bf16.msra.mxu0 0
        %683 = vmatpush.bf16.msra.mxu0 0
        %684 = vmatpush.bf16.msra.mxu0 0
        %685 = vmatpush.bf16.msra.mxu0 %v673
        %686 = vmatpush.bf16.msra.mxu0 %v672
        %687 = vmatmul.bf16.gmra.mxu0 %v677
        %v688 = vpop.f32.mrf.mxu0
        %v689 = vadd.f32 %v662, %v688
        %v690 = vpop.f32.mrf.mxu0
        %691 = vdwg.mxu0
        %v692 = vmul.f32 %v689, 0.35355338
        %v693 = vld [vmem:[%s5] sm:$0xf]
        %v694 = vld [vmem:[%s5 + $0x4] sm:$0xf]
        %v695 = vld [vmem:[%s5 + $0x8] sm:$0xf]
        %v696 = vld [vmem:[%s5 + $0xc] sm:$0xf]
        %v697 = vld [vmem:[%s6] sm:$0x1]
        %v699 = vperm.slane %v697, 0
        %v705 = vunpack.c.l.b16 %v693
        %v706 = vunpack.c.l.b16 %v694
        %v707 = vunpack.c.l.b16 %v695
        %v708 = vunpack.c.l.b16 %v696
        %v709 = vpack.c.b16 %v706, %v705
        %v710 = vpack.c.b16 %v708, %v707
        %713 = vmatpush.bf16.msra.mxu0 0
        %714 = vmatpush.bf16.msra.mxu0 0
        %715 = vmatpush.bf16.msra.mxu0 0
        %716 = vmatpush.bf16.msra.mxu0 0
        %717 = vmatpush.bf16.msra.mxu0 0
        %718 = vmatpush.bf16.msra.mxu0 0
        %719 = vmatpush.bf16.msra.mxu0 %v710
        %720 = vmatpush.bf16.msra.mxu0 %v709
        %721 = vmatmul.bf16.gmra.mxu0 %v677
        %v722 = vpop.f32.mrf.mxu0
        %v723 = vadd.f32 %v699, %v722
        %v724 = vpop.f32.mrf.mxu0
        %725 = vdwg.mxu0
        %v726 = vld [vmem:[%s7] sm:$0xf]
        %v727 = vld [vmem:[%s7 + $0x4] sm:$0xf]
        %v728 = vld [vmem:[%s7 + $0x8] sm:$0xf]
        %v729 = vld [vmem:[%s7 + $0xc] sm:$0xf]
        %v730 = vld [vmem:[%s8] sm:$0x1]
        %v732 = vperm.slane %v730, 0
        %v738 = vunpack.c.l.b16 %v726
        %v739 = vunpack.c.l.b16 %v727
        %v740 = vunpack.c.l.b16 %v728
        %v741 = vunpack.c.l.b16 %v729
        %v742 = vpack.c.b16 %v739, %v738
        %v743 = vpack.c.b16 %v741, %v740
        %746 = vmatpush.bf16.msra.mxu0 0
        %747 = vmatpush.bf16.msra.mxu0 0
        %748 = vmatpush.bf16.msra.mxu0 0
        %749 = vmatpush.bf16.msra.mxu0 0
        %750 = vmatpush.bf16.msra.mxu0 0
        %751 = vmatpush.bf16.msra.mxu0 0
        %752 = vmatpush.bf16.msra.mxu0 %v743
        %753 = vmatpush.bf16.msra.mxu0 %v742
        %754 = vmatmul.bf16.gmra.mxu0 %v677
        %v755 = vpop.f32.mrf.mxu0
        %v756 = vadd.f32 %v732, %v755
        %v757 = vpop.f32.mrf.mxu0
        %758 = vdwg.mxu0
        %v759 = vpack.c.bf16 %v692, %v692
        %761 = vrot.lane.b32.xlu0 %v759, 120
        %v762 = vpop.permute.xlu0 %761
        %763 = vrot.lane.b32.xlu0 %v759, 112
        %v764 = vpop.permute.xlu0 %763
        %765 = vrot.lane.b32.xlu0 %v759, 104
        %v766 = vpop.permute.xlu0 %765
        %v769 = vpack.i.b16 %v762, %v759
        %v770 = vshrl.u32 %v759, 16
        %v771 = vshrl.u32 %v762, 16
        %v772 = vpack.i.b16 %v771, %v770
        %v775 = vpack.i.b16 %v766, %v764
        %v776 = vshrl.u32 %v764, 16
        %v777 = vshrl.u32 %v766, 16
        %v778 = vpack.i.b16 %v777, %v776
        %v781 = vunpack.c.l.s4 1983009808
        %v782 = vunpack.c.0.s8 %v781
        %v783 = vperm.slane %v769, %v782
        %v786 = vunpack.c.l.s4 1983009808
        %v787 = vunpack.c.0.s8 %v786
        %v788 = vperm.slane %v775, %v787
        %v789 = vrot.slane %v788, 4
        %vm790 = vcmask 1047556
        %v791 = vsel %vm790, %v789, %v783
        %v792 = vrot.slane %v783, 4
        %v793 = vsel %vm790, %v788, %v792
        %v795 = vunpack.c.l.s4 1934713408
        %v796 = vunpack.c.0.s8 %v795
        %v797 = vperm.slane %v791, %v796
        %v799 = vunpack.c.l.s4 1934713408
        %v800 = vunpack.c.0.s8 %v799
        %v801 = vperm.slane %v793, %v800
        %v802 = vrot.slane %v797, 4
        %v803 = vsel %vm790, 0, %v802
        %v804 = vrot.slane %v801, 4
        %v805 = vsel %vm790, 0, %v804
        %v808 = vunpack.c.l.s4 1983009808
        %v809 = vunpack.c.0.s8 %v808
        %v810 = vperm.slane %v772, %v809
        %v813 = vunpack.c.l.s4 1983009808
        %v814 = vunpack.c.0.s8 %v813
        %v815 = vperm.slane %v778, %v814
        %v816 = vrot.slane %v815, 4
        %v817 = vsel %vm790, %v816, %v810
        %v818 = vrot.slane %v810, 4
        %v819 = vsel %vm790, %v815, %v818
        %v821 = vunpack.c.l.s4 1934713408
        %v822 = vunpack.c.0.s8 %v821
        %v823 = vperm.slane %v817, %v822
        %v825 = vunpack.c.l.s4 1934713408
        %v826 = vunpack.c.0.s8 %v825
        %v827 = vperm.slane %v819, %v826
        %v828 = vrot.slane %v823, 4
        %v829 = vsel %vm790, 0, %v828
        %v830 = vrot.slane %v827, 4
        %v831 = vsel %vm790, 0, %v830
        %v832 = vsel %vm790, %v804, %v797
        %v834 = vunpack.c.l.s4 1983009808
        %v835 = vunpack.c.0.s8 %v834
        %v836 = vperm.slane %v832, %v835
        %v837 = vrot.slane %v805, 4
        %v838 = vsel %vm790, %v837, %v803
        %v840 = vunpack.c.l.s4 1983009808
        %v841 = vunpack.c.0.s8 %v840
        %v842 = vperm.slane %v838, %v841
        %v843 = vrot.slane %v842, 4
        %v844 = vsel %vm790, %v843, %v836
        %v846 = vunpack.c.l.s4 1934713408
        %v847 = vunpack.c.0.s8 %v846
        %v848 = vperm.slane %v844, %v847
        %v849 = vrot.slane %v848, 4
        %v850 = vsel %vm790, 0, %v849
        %v851 = vsel %vm790, %v830, %v823
        %v853 = vunpack.c.l.s4 1983009808
        %v854 = vunpack.c.0.s8 %v853
        %v855 = vperm.slane %v851, %v854
        %v856 = vrot.slane %v831, 4
        %v857 = vsel %vm790, %v856, %v829
        %v859 = vunpack.c.l.s4 1983009808
        %v860 = vunpack.c.0.s8 %v859
        %v861 = vperm.slane %v857, %v860
        %v862 = vrot.slane %v861, 4
        %v863 = vsel %vm790, %v862, %v855
        %v865 = vunpack.c.l.s4 1934713408
        %v866 = vunpack.c.0.s8 %v865
        %v867 = vperm.slane %v863, %v866
        %v868 = vrot.slane %v867, 4
        %v869 = vsel %vm790, 0, %v868
        %v872 = vpack.i.b16 %v867, %v848
        %v874 = vshrl.u32 %v848, 16
        %v875 = vshrl.u32 %v867, 16
        %v876 = vpack.i.b16 %v875, %v874
        %v880 = vpack.i.b16 %v869, %v850
        %v882 = vshrl.u32 %v850, 16
        %v883 = vshrl.u32 %v869, 16
        %v884 = vpack.i.b16 %v883, %v882
        %vm886 = vcmask 60416
        %887 = vst.msk [vmem:[#allocation2] sm:$0xf] %vm886, %v872
        %888 = vst.msk [vmem:[#allocation2 + $0x4] sm:$0xf] %vm886, %v876
        %889 = vst.msk [vmem:[#allocation2 + $0x8] sm:$0xf] %vm886, %v880
        %890 = vst.msk [vmem:[#allocation2 + $0xc] sm:$0xf] %vm886, %v884
        %v891 = vpack.c.bf16 %v723, %v723
        %893 = vrot.lane.b32.xlu0 %v891, 120
        %v894 = vpop.permute.xlu0 %893
        %895 = vrot.lane.b32.xlu0 %v891, 112
        %v896 = vpop.permute.xlu0 %895
        %897 = vrot.lane.b32.xlu0 %v891, 104
        %v898 = vpop.permute.xlu0 %897
        %v901 = vpack.i.b16 %v894, %v891
        %v902 = vshrl.u32 %v891, 16
        %v903 = vshrl.u32 %v894, 16
        %v904 = vpack.i.b16 %v903, %v902
        %v907 = vpack.i.b16 %v898, %v896
        %v908 = vshrl.u32 %v896, 16
        %v909 = vshrl.u32 %v898, 16
        %v910 = vpack.i.b16 %v909, %v908
        %v913 = vunpack.c.l.s4 1983009808
        %v914 = vunpack.c.0.s8 %v913
        %v915 = vperm.slane %v901, %v914
        %v918 = vunpack.c.l.s4 1983009808
        %v919 = vunpack.c.0.s8 %v918
        %v920 = vperm.slane %v907, %v919
        %v921 = vrot.slane %v920, 4
        %v922 = vsel %vm790, %v921, %v915
        %v923 = vrot.slane %v915, 4
        %v924 = vsel %vm790, %v920, %v923
        %v926 = vunpack.c.l.s4 1934713408
        %v927 = vunpack.c.0.s8 %v926
        %v928 = vperm.slane %v922, %v927
        %v930 = vunpack.c.l.s4 1934713408
        %v931 = vunpack.c.0.s8 %v930
        %v932 = vperm.slane %v924, %v931
        %v933 = vrot.slane %v928, 4
        %v934 = vsel %vm790, 0, %v933
        %v935 = vrot.slane %v932, 4
        %v936 = vsel %vm790, 0, %v935
        %v939 = vunpack.c.l.s4 1983009808
        %v940 = vunpack.c.0.s8 %v939
        %v941 = vperm.slane %v904, %v940
        %v944 = vunpack.c.l.s4 1983009808
        %v945 = vunpack.c.0.s8 %v944
        %v946 = vperm.slane %v910, %v945
        %v947 = vrot.slane %v946, 4
        %v948 = vsel %vm790, %v947, %v941
        %v949 = vrot.slane %v941, 4
        %v950 = vsel %vm790, %v946, %v949
        %v952 = vunpack.c.l.s4 1934713408
        %v953 = vunpack.c.0.s8 %v952
        %v954 = vperm.slane %v948, %v953
        %v956 = vunpack.c.l.s4 1934713408
        %v957 = vunpack.c.0.s8 %v956
        %v958 = vperm.slane %v950, %v957
        %v959 = vrot.slane %v954, 4
        %v960 = vsel %vm790, 0, %v959
        %v961 = vrot.slane %v958, 4
        %v962 = vsel %vm790, 0, %v961
        %v963 = vsel %vm790, %v935, %v928
        %v965 = vunpack.c.l.s4 1983009808
        %v966 = vunpack.c.0.s8 %v965
        %v967 = vperm.slane %v963, %v966
        %v968 = vrot.slane %v936, 4
        %v969 = vsel %vm790, %v968, %v934
        %v971 = vunpack.c.l.s4 1983009808
        %v972 = vunpack.c.0.s8 %v971
        %v973 = vperm.slane %v969, %v972
        %v974 = vrot.slane %v973, 4
        %v975 = vsel %vm790, %v974, %v967
        %v977 = vunpack.c.l.s4 1934713408
        %v978 = vunpack.c.0.s8 %v977
        %v979 = vperm.slane %v975, %v978
        %v980 = vrot.slane %v979, 4
        %v981 = vsel %vm790, 0, %v980
        %v982 = vsel %vm790, %v961, %v954
        %v984 = vunpack.c.l.s4 1983009808
        %v985 = vunpack.c.0.s8 %v984
        %v986 = vperm.slane %v982, %v985
        %v987 = vrot.slane %v962, 4
        %v988 = vsel %vm790, %v987, %v960
        %v990 = vunpack.c.l.s4 1983009808
        %v991 = vunpack.c.0.s8 %v990
        %v992 = vperm.slane %v988, %v991
        %v993 = vrot.slane %v992, 4
        %v994 = vsel %vm790, %v993, %v986
        %v996 = vunpack.c.l.s4 1934713408
        %v997 = vunpack.c.0.s8 %v996
        %v998 = vperm.slane %v994, %v997
        %v999 = vrot.slane %v998, 4
        %v1000 = vsel %vm790, 0, %v999
        %v1003 = vpack.i.b16 %v998, %v979
        %v1005 = vshrl.u32 %v979, 16
        %v1006 = vshrl.u32 %v998, 16
        %v1007 = vpack.i.b16 %v1006, %v1005
        %v1011 = vpack.i.b16 %v1000, %v981
        %v1013 = vshrl.u32 %v981, 16
        %v1014 = vshrl.u32 %v1000, 16
        %v1015 = vpack.i.b16 %v1014, %v1013
        %1017 = vst.msk [vmem:[#allocation3] sm:$0xf] %vm886, %v1003
        %1018 = vst.msk [vmem:[#allocation3 + $0x4] sm:$0xf] %vm886, %v1007
        %1019 = vst.msk [vmem:[#allocation3 + $0x8] sm:$0xf] %vm886, %v1011
        %1020 = vst.msk [vmem:[#allocation3 + $0xc] sm:$0xf] %vm886, %v1015
        %v1021 = vpack.c.bf16 %v756, %v756
        %1023 = vrot.lane.b32.xlu0 %v1021, 120
        %v1024 = vpop.permute.xlu0 %1023
        %1025 = vrot.lane.b32.xlu0 %v1021, 112
        %v1026 = vpop.permute.xlu0 %1025
        %1027 = vrot.lane.b32.xlu0 %v1021, 104
        %v1028 = vpop.permute.xlu0 %1027
        %v1031 = vpack.i.b16 %v1024, %v1021
        %v1032 = vshrl.u32 %v1021, 16
        %v1033 = vshrl.u32 %v1024, 16
        %v1034 = vpack.i.b16 %v1033, %v1032
        %v1037 = vpack.i.b16 %v1028, %v1026
        %v1038 = vshrl.u32 %v1026, 16
        %v1039 = vshrl.u32 %v1028, 16
        %v1040 = vpack.i.b16 %v1039, %v1038
        %v1043 = vunpack.c.l.s4 1983009808
        %v1044 = vunpack.c.0.s8 %v1043
        %v1045 = vperm.slane %v1031, %v1044
        %v1048 = vunpack.c.l.s4 1983009808
        %v1049 = vunpack.c.0.s8 %v1048
        %v1050 = vperm.slane %v1037, %v1049
        %v1051 = vrot.slane %v1050, 4
        %v1052 = vsel %vm790, %v1051, %v1045
        %v1053 = vrot.slane %v1045, 4
        %v1054 = vsel %vm790, %v1050, %v1053
        %v1056 = vunpack.c.l.s4 1934713408
        %v1057 = vunpack.c.0.s8 %v1056
        %v1058 = vperm.slane %v1052, %v1057
        %v1060 = vunpack.c.l.s4 1934713408
        %v1061 = vunpack.c.0.s8 %v1060
        %v1062 = vperm.slane %v1054, %v1061
        %v1063 = vrot.slane %v1058, 4
        %v1064 = vsel %vm790, 0, %v1063
        %v1065 = vrot.slane %v1062, 4
        %v1066 = vsel %vm790, 0, %v1065
        %v1069 = vunpack.c.l.s4 1983009808
        %v1070 = vunpack.c.0.s8 %v1069
        %v1071 = vperm.slane %v1034, %v1070
        %v1074 = vunpack.c.l.s4 1983009808
        %v1075 = vunpack.c.0.s8 %v1074
        %v1076 = vperm.slane %v1040, %v1075
        %v1077 = vrot.slane %v1076, 4
        %v1078 = vsel %vm790, %v1077, %v1071
        %v1079 = vrot.slane %v1071, 4
        %v1080 = vsel %vm790, %v1076, %v1079
        %v1082 = vunpack.c.l.s4 1934713408
        %v1083 = vunpack.c.0.s8 %v1082
        %v1084 = vperm.slane %v1078, %v1083
        %v1086 = vunpack.c.l.s4 1934713408
        %v1087 = vunpack.c.0.s8 %v1086
        %v1088 = vperm.slane %v1080, %v1087
        %v1089 = vrot.slane %v1084, 4
        %v1090 = vsel %vm790, 0, %v1089
        %v1091 = vrot.slane %v1088, 4
        %v1092 = vsel %vm790, 0, %v1091
        %v1093 = vsel %vm790, %v1065, %v1058
        %v1095 = vunpack.c.l.s4 1983009808
        %v1096 = vunpack.c.0.s8 %v1095
        %v1097 = vperm.slane %v1093, %v1096
        %v1098 = vrot.slane %v1066, 4
        %v1099 = vsel %vm790, %v1098, %v1064
        %v1101 = vunpack.c.l.s4 1983009808
        %v1102 = vunpack.c.0.s8 %v1101
        %v1103 = vperm.slane %v1099, %v1102
        %v1104 = vrot.slane %v1103, 4
        %v1105 = vsel %vm790, %v1104, %v1097
        %v1107 = vunpack.c.l.s4 1934713408
        %v1108 = vunpack.c.0.s8 %v1107
        %v1109 = vperm.slane %v1105, %v1108
        %v1110 = vrot.slane %v1109, 4
        %v1111 = vsel %vm790, 0, %v1110
        %v1112 = vsel %vm790, %v1091, %v1084
        %v1114 = vunpack.c.l.s4 1983009808
        %v1115 = vunpack.c.0.s8 %v1114
        %v1116 = vperm.slane %v1112, %v1115
        %v1117 = vrot.slane %v1092, 4
        %v1118 = vsel %vm790, %v1117, %v1090
        %v1120 = vunpack.c.l.s4 1983009808
        %v1121 = vunpack.c.0.s8 %v1120
        %v1122 = vperm.slane %v1118, %v1121
        %v1123 = vrot.slane %v1122, 4
        %v1124 = vsel %vm790, %v1123, %v1116
        %v1126 = vunpack.c.l.s4 1934713408
        %v1127 = vunpack.c.0.s8 %v1126
        %v1128 = vperm.slane %v1124, %v1127
        %v1129 = vrot.slane %v1128, 4
        %v1130 = vsel %vm790, 0, %v1129
        %v1133 = vpack.i.b16 %v1128, %v1109
        %v1135 = vshrl.u32 %v1109, 16
        %v1136 = vshrl.u32 %v1128, 16
        %v1137 = vpack.i.b16 %v1136, %v1135
        %v1141 = vpack.i.b16 %v1130, %v1111
        %v1143 = vshrl.u32 %v1111, 16
        %v1144 = vshrl.u32 %v1130, 16
        %v1145 = vpack.i.b16 %v1144, %v1143
        %1147 = vst.msk [vmem:[#allocation4] sm:$0xf] %vm886, %v1133
        %1148 = vst.msk [vmem:[#allocation4 + $0x4] sm:$0xf] %vm886, %v1137
        %1149 = vst.msk [vmem:[#allocation4 + $0x8] sm:$0xf] %vm886, %v1141
        %1150 = vst.msk [vmem:[#allocation4 + $0xc] sm:$0xf] %vm886, %v1145
        %v1151 = vld [vmem:[#allocation2] sm:$0xf]
        %v1152 = vld [vmem:[#allocation2 + $0x4] sm:$0xf]
        %v1153 = vld [vmem:[#allocation2 + $0x8] sm:$0xf]
        %v1154 = vld [vmem:[#allocation2 + $0xc] sm:$0xf]
        %v1155 = vld [vmem:[#allocation3] sm:$0xf]
        %v1156 = vld [vmem:[#allocation3 + $0x4] sm:$0xf]
        %v1157 = vld [vmem:[#allocation3 + $0x8] sm:$0xf]
        %v1158 = vld [vmem:[#allocation3 + $0xc] sm:$0xf]
        %v1159 = vld [vmem:[#allocation4] sm:$0xf]
        %v1160 = vld [vmem:[#allocation4 + $0x4] sm:$0xf]
        %v1161 = vld [vmem:[#allocation4 + $0x8] sm:$0xf]
        %v1162 = vld [vmem:[#allocation4 + $0xc] sm:$0xf]
        %vm1163 = vcmask 64512
        %v1165 = vsel %vm1163, %v1151, 0
        %v1168 = vsel %vm1163, %v1155, 0
        %1170 = vmatpush.bf16.xpose.msra.mxu0 0
        %1171 = vmatpush.bf16.xpose.msra.mxu0 0
        %1172 = vmatpush.bf16.xpose.msra.mxu0 0
        %1173 = vmatpush.bf16.xpose.msra.mxu0 0
        %1174 = vmatpush.bf16.xpose.msra.mxu0 0
        %1175 = vmatpush.bf16.xpose.msra.mxu0 0
        %1176 = vmatpush.bf16.xpose.msra.mxu0 0
        %1177 = vmatpush.bf16.xpose.msra.mxu0 %v1168
        %1178 = vmatmul.bf16.gmra.mxu0 %v1165
        %v1179 = vpop.f32.mrf.mxu0
        %v1180 = vadd.f32 0.0, %v1179
        %v1181 = vpop.f32.mrf.mxu0
        %1182 = vdwg.mxu0
        %v1184 = vsel %vm1163, %v1152, 0
        %v1187 = vsel %vm1163, %v1156, 0
        %1189 = vmatpush.bf16.xpose.msra.mxu0 0
        %1190 = vmatpush.bf16.xpose.msra.mxu0 0
        %1191 = vmatpush.bf16.xpose.msra.mxu0 0
        %1192 = vmatpush.bf16.xpose.msra.mxu0 0
        %1193 = vmatpush.bf16.xpose.msra.mxu0 0
        %1194 = vmatpush.bf16.xpose.msra.mxu0 0
        %1195 = vmatpush.bf16.xpose.msra.mxu0 0
        %1196 = vmatpush.bf16.xpose.msra.mxu0 %v1187
        %1197 = vmatmul.bf16.gmra.mxu0 %v1184
        %v1198 = vpop.f32.mrf.mxu0
        %v1199 = vadd.f32 0.0, %v1198
        %v1200 = vpop.f32.mrf.mxu0
        %1201 = vdwg.mxu0
        %v1203 = vsel %vm1163, %v1153, 0
        %v1206 = vsel %vm1163, %v1157, 0
        %1208 = vmatpush.bf16.xpose.msra.mxu0 0
        %1209 = vmatpush.bf16.xpose.msra.mxu0 0
        %1210 = vmatpush.bf16.xpose.msra.mxu0 0
        %1211 = vmatpush.bf16.xpose.msra.mxu0 0
        %1212 = vmatpush.bf16.xpose.msra.mxu0 0
        %1213 = vmatpush.bf16.xpose.msra.mxu0 0
        %1214 = vmatpush.bf16.xpose.msra.mxu0 0
        %1215 = vmatpush.bf16.xpose.msra.mxu0 %v1206
        %1216 = vmatmul.bf16.gmra.mxu0 %v1203
        %v1217 = vpop.f32.mrf.mxu0
        %v1218 = vadd.f32 0.0, %v1217
        %v1219 = vpop.f32.mrf.mxu0
        %1220 = vdwg.mxu0
        %v1222 = vsel %vm1163, %v1154, 0
        %v1225 = vsel %vm1163, %v1158, 0
        %1227 = vmatpush.bf16.xpose.msra.mxu0 0
        %1228 = vmatpush.bf16.xpose.msra.mxu0 0
        %1229 = vmatpush.bf16.xpose.msra.mxu0 0
        %1230 = vmatpush.bf16.xpose.msra.mxu0 0
        %1231 = vmatpush.bf16.xpose.msra.mxu0 0
        %1232 = vmatpush.bf16.xpose.msra.mxu0 0
        %1233 = vmatpush.bf16.xpose.msra.mxu0 0
        %1234 = vmatpush.bf16.xpose.msra.mxu0 %v1225
        %1235 = vmatmul.bf16.gmra.mxu0 %v1222
        %v1236 = vpop.f32.mrf.mxu0
        %v1237 = vadd.f32 0.0, %v1236
        %v1238 = vpop.f32.mrf.mxu0
        %1239 = vdwg.mxu0
        %v1240 = vsel %vm1163, %v1180, -inf
        %1241 = vmax.xlane.f32.xlu0 %v1240
        %v1242 = vpop.xlane.xlu0 %1241
        %v1243 = vsel %vm1163, %v1199, -inf
        %1244 = vmax.xlane.f32.xlu0 %v1243
        %v1245 = vpop.xlane.xlu0 %1244
        %v1246 = vsel %vm1163, %v1218, -inf
        %1247 = vmax.xlane.f32.xlu0 %v1246
        %v1248 = vpop.xlane.xlu0 %1247
        %v1249 = vsel %vm1163, %v1237, -inf
        %1250 = vmax.xlane.f32.xlu0 %v1249
        %v1251 = vpop.xlane.xlu0 %1250
        %v1252 = vsub.f32 -inf, %v1242
        %v1253 = vsub.f32 -inf, %v1245
        %v1254 = vsub.f32 -inf, %v1248
        %v1255 = vsub.f32 -inf, %v1251
        %v1256 = vmul.f32 %v1252, 1.442695
        %v1257 = vpow.pop %v1256
        %v1258 = vmul.f32 %v1253, 1.442695
        %v1259 = vpow.pop %v1258
        %v1260 = vmul.f32 %v1254, 1.442695
        %v1261 = vpow.pop %v1260
        %v1262 = vmul.f32 %v1255, 1.442695
        %v1263 = vpow.pop %v1262
        %v1264 = vsub.f32 %v1180, %v1242
        %v1265 = vsub.f32 %v1199, %v1245
        %v1266 = vsub.f32 %v1218, %v1248
        %v1267 = vsub.f32 %v1237, %v1251
        %v1268 = vmul.f32 %v1264, 1.442695
        %v1269 = vpow.pop %v1268
        %v1270 = vmul.f32 %v1265, 1.442695
        %v1271 = vpow.pop %v1270
        %v1272 = vmul.f32 %v1266, 1.442695
        %v1273 = vpow.pop %v1272
        %v1274 = vmul.f32 %v1267, 1.442695
        %v1275 = vpow.pop %v1274
        %v1276 = vmul.f32 %v1257, 0.0
        %v1277 = vmul.f32 %v1259, 0.0
        %v1278 = vmul.f32 %v1261, 0.0
        %v1279 = vmul.f32 %v1263, 0.0
        %v1280 = vsel %vm1163, %v1269, 0.0
        %1281 = vadd.xlane.f32.xlu0 %v1280
        %v1282 = vpop.xlane.xlu0 %1281
        %v1283 = vsel %vm1163, %v1271, 0.0
        %1284 = vadd.xlane.f32.xlu0 %v1283
        %v1285 = vpop.xlane.xlu0 %1284
        %v1286 = vsel %vm1163, %v1273, 0.0
        %1287 = vadd.xlane.f32.xlu0 %v1286
        %v1288 = vpop.xlane.xlu0 %1287
        %v1289 = vsel %vm1163, %v1275, 0.0
        %1290 = vadd.xlane.f32.xlu0 %v1289
        %v1291 = vpop.xlane.xlu0 %1290
        %v1292 = vadd.f32 %v1276, %v1282
        %v1293 = vadd.f32 %v1277, %v1285
        %v1294 = vadd.f32 %v1278, %v1288
        %v1295 = vadd.f32 %v1279, %v1291
        %v1296 = vpack.c.bf16 %v1269, %v1269
        %v1297 = vpack.c.bf16 %v1271, %v1271
        %v1298 = vpack.c.bf16 %v1273, %v1273
        %v1299 = vpack.c.bf16 %v1275, %v1275
        %v1301 = vsel %vm1163, %v1296, 0
        %vm1303 = vcmask 1043456
        %v1305 = vsel %vm1303, %v1159, 0
        %1307 = vmatpush.bf16.msra.mxu0 0
        %1308 = vmatpush.bf16.msra.mxu0 0
        %1309 = vmatpush.bf16.msra.mxu0 0
        %1310 = vmatpush.bf16.msra.mxu0 0
        %1311 = vmatpush.bf16.msra.mxu0 0
        %1312 = vmatpush.bf16.msra.mxu0 0
        %1313 = vmatpush.bf16.msra.mxu0 0
        %1314 = vmatpush.bf16.msra.mxu0 %v1305
        %1315 = vmatmul.bf16.gmra.mxu0 %v1301
        %v1316 = vpop.f32.mrf.mxu0
        %v1317 = vadd.f32 0.0, %v1316
        %v1318 = vpop.f32.mrf.mxu0
        %1319 = vdwg.mxu0
        %v1321 = vsel %vm1163, %v1297, 0
        %v1324 = vsel %vm1303, %v1160, 0
        %1326 = vmatpush.bf16.msra.mxu0 0
        %1327 = vmatpush.bf16.msra.mxu0 0
        %1328 = vmatpush.bf16.msra.mxu0 0
        %1329 = vmatpush.bf16.msra.mxu0 0
        %1330 = vmatpush.bf16.msra.mxu0 0
        %1331 = vmatpush.bf16.msra.mxu0 0
        %1332 = vmatpush.bf16.msra.mxu0 0
        %1333 = vmatpush.bf16.msra.mxu0 %v1324
        %1334 = vmatmul.bf16.gmra.mxu0 %v1321
        %v1335 = vpop.f32.mrf.mxu0
        %v1336 = vadd.f32 0.0, %v1335
        %v1337 = vpop.f32.mrf.mxu0
        %1338 = vdwg.mxu0
        %v1340 = vsel %vm1163, %v1298, 0
        %v1343 = vsel %vm1303, %v1161, 0
        %1345 = vmatpush.bf16.msra.mxu0 0
        %1346 = vmatpush.bf16.msra.mxu0 0
        %1347 = vmatpush.bf16.msra.mxu0 0
        %1348 = vmatpush.bf16.msra.mxu0 0
        %1349 = vmatpush.bf16.msra.mxu0 0
        %1350 = vmatpush.bf16.msra.mxu0 0
        %1351 = vmatpush.bf16.msra.mxu0 0
        %1352 = vmatpush.bf16.msra.mxu0 %v1343
        %1353 = vmatmul.bf16.gmra.mxu0 %v1340
        %v1354 = vpop.f32.mrf.mxu0
        %v1355 = vadd.f32 0.0, %v1354
        %v1356 = vpop.f32.mrf.mxu0
        %1357 = vdwg.mxu0
        %v1359 = vsel %vm1163, %v1299, 0
        %v1362 = vsel %vm1303, %v1162, 0
        %1364 = vmatpush.bf16.msra.mxu0 0
        %1365 = vmatpush.bf16.msra.mxu0 0
        %1366 = vmatpush.bf16.msra.mxu0 0
        %1367 = vmatpush.bf16.msra.mxu0 0
        %1368 = vmatpush.bf16.msra.mxu0 0
        %1369 = vmatpush.bf16.msra.mxu0 0
        %1370 = vmatpush.bf16.msra.mxu0 0
        %1371 = vmatpush.bf16.msra.mxu0 %v1362
        %1372 = vmatmul.bf16.gmra.mxu0 %v1359
        %v1373 = vpop.f32.mrf.mxu0
        %v1374 = vadd.f32 0.0, %v1373
        %v1375 = vpop.f32.mrf.mxu0
        %1376 = vdwg.mxu0
        %v1377 = vadd.f32 %v1276, %v1317
        %v1378 = vadd.f32 %v1277, %v1336
        %v1379 = vadd.f32 %v1278, %v1355
        %v1380 = vadd.f32 %v1279, %v1374
        %v1381 = vrcp.pop %v1292
        %v1382 = vrcp.pop %v1293
        %v1383 = vrcp.pop %v1294
        %v1384 = vrcp.pop %v1295
        %v1385 = vmul.f32 %v1377, %v1381
        %v1386 = vmul.f32 %v1378, %v1382
        %v1387 = vmul.f32 %v1379, %v1383
        %v1388 = vmul.f32 %v1380, %v1384
        %1389 = vst.msk [vmem:[#allocation5] sm:$0xff] %vm1163, %v1385
        %1390 = vst.msk [vmem:[#allocation5 + $0x8] sm:$0xff] %vm1163, %v1386
        %1391 = vst.msk [vmem:[#allocation5 + $0x10] sm:$0xff] %vm1163, %v1387
        %1392 = vst.msk [vmem:[#allocation5 + $0x18] sm:$0xff] %vm1163, %v1388
        %v1393 = vld [vmem:[#allocation5] sm:$0xff]
        %v1394 = vld [vmem:[#allocation5 + $0x8] sm:$0xff]
        %v1395 = vld [vmem:[#allocation5 + $0x10] sm:$0xff]
        %v1396 = vld [vmem:[#allocation5 + $0x18] sm:$0xff]
        %v1397 = vpack.c.bf16 %v1393, %v1393
        %v1398 = vpack.c.bf16 %v1394, %v1394
        %v1399 = vpack.c.bf16 %v1395, %v1395
        %v1400 = vpack.c.bf16 %v1396, %v1396
        %v1403 = vpack.i.b16 %v1398, %v1397
        %v1404 = vshrl.u32 %v1397, 16
        %v1405 = vshrl.u32 %v1398, 16
        %v1406 = vpack.i.b16 %v1405, %v1404
        %v1409 = vpack.i.b16 %v1400, %v1399
        %v1410 = vshrl.u32 %v1399, 16
        %v1411 = vshrl.u32 %v1400, 16
        %v1412 = vpack.i.b16 %v1411, %v1410
        %v1415 = vunpack.c.l.s4 1983009808
        %v1416 = vunpack.c.0.s8 %v1415
        %v1417 = vperm.slane %v1403, %v1416
        %v1420 = vunpack.c.l.s4 1983009808
        %v1421 = vunpack.c.0.s8 %v1420
        %v1422 = vperm.slane %v1409, %v1421
        %v1423 = vrot.slane %v1422, 4
        %v1424 = vsel %vm790, %v1423, %v1417
        %v1425 = vrot.slane %v1417, 4
        %v1426 = vsel %vm790, %v1422, %v1425
        %v1428 = vunpack.c.l.s4 1934713408
        %v1429 = vunpack.c.0.s8 %v1428
        %v1430 = vperm.slane %v1424, %v1429
        %v1432 = vunpack.c.l.s4 1934713408
        %v1433 = vunpack.c.0.s8 %v1432
        %v1434 = vperm.slane %v1426, %v1433
        %v1435 = vrot.slane %v1430, 4
        %v1436 = vsel %vm790, 0, %v1435
        %v1437 = vrot.slane %v1434, 4
        %v1438 = vsel %vm790, 0, %v1437
        %v1441 = vunpack.c.l.s4 1983009808
        %v1442 = vunpack.c.0.s8 %v1441
        %v1443 = vperm.slane %v1406, %v1442
        %v1446 = vunpack.c.l.s4 1983009808
        %v1447 = vunpack.c.0.s8 %v1446
        %v1448 = vperm.slane %v1412, %v1447
        %v1449 = vrot.slane %v1448, 4
        %v1450 = vsel %vm790, %v1449, %v1443
        %v1451 = vrot.slane %v1443, 4
        %v1452 = vsel %vm790, %v1448, %v1451
        %v1454 = vunpack.c.l.s4 1934713408
        %v1455 = vunpack.c.0.s8 %v1454
        %v1456 = vperm.slane %v1450, %v1455
        %v1458 = vunpack.c.l.s4 1934713408
        %v1459 = vunpack.c.0.s8 %v1458
        %v1460 = vperm.slane %v1452, %v1459
        %v1461 = vrot.slane %v1456, 4
        %v1462 = vsel %vm790, 0, %v1461
        %v1463 = vrot.slane %v1460, 4
        %v1464 = vsel %vm790, 0, %v1463
        %v1465 = vsel %vm790, %v1437, %v1430
        %v1467 = vunpack.c.l.s4 1983009808
        %v1468 = vunpack.c.0.s8 %v1467
        %v1469 = vperm.slane %v1465, %v1468
        %v1470 = vrot.slane %v1438, 4
        %v1471 = vsel %vm790, %v1470, %v1436
        %v1473 = vunpack.c.l.s4 1983009808
        %v1474 = vunpack.c.0.s8 %v1473
        %v1475 = vperm.slane %v1471, %v1474
        %v1476 = vrot.slane %v1475, 4
        %v1477 = vsel %vm790, %v1476, %v1469
        %v1479 = vunpack.c.l.s4 1934713408
        %v1480 = vunpack.c.0.s8 %v1479
        %v1481 = vperm.slane %v1477, %v1480
        %v1482 = vrot.slane %v1481, 4
        %v1483 = vsel %vm790, 0, %v1482
        %v1484 = vsel %vm790, %v1463, %v1456
        %v1486 = vunpack.c.l.s4 1983009808
        %v1487 = vunpack.c.0.s8 %v1486
        %v1488 = vperm.slane %v1484, %v1487
        %v1489 = vrot.slane %v1464, 4
        %v1490 = vsel %vm790, %v1489, %v1462
        %v1492 = vunpack.c.l.s4 1983009808
        %v1493 = vunpack.c.0.s8 %v1492
        %v1494 = vperm.slane %v1490, %v1493
        %v1495 = vrot.slane %v1494, 4
        %v1496 = vsel %vm790, %v1495, %v1488
        %v1498 = vunpack.c.l.s4 1934713408
        %v1499 = vunpack.c.0.s8 %v1498
        %v1500 = vperm.slane %v1496, %v1499
        %v1501 = vrot.slane %v1500, 4
        %v1502 = vsel %vm790, 0, %v1501
        %v1505 = vpack.i.b16 %v1500, %v1481
        %v1506 = vshrl.u32 %v1481, 16
        %v1507 = vshrl.u32 %v1500, 16
        %v1508 = vpack.i.b16 %v1507, %v1506
        %v1511 = vpack.i.b16 %v1502, %v1483
        %v1512 = vshrl.u32 %v1483, 16
        %v1513 = vshrl.u32 %v1502, 16
        %v1514 = vpack.i.b16 %v1513, %v1512
        %v1515 = vunpack.c.l.b16 %v1508
        %v1516 = vpack.c.b16 %v1515, %v1515
        %1517 = vrot.lane.b32.xlu0 %v1516, 8
        %v1518 = vpop.permute.xlu0 %1517
        %v1519 = vunpack.c.l.b16 %v1511
        %v1520 = vpack.c.b16 %v1519, %v1519
        %1521 = vrot.lane.b32.xlu0 %v1520, 16
        %v1522 = vpop.permute.xlu0 %1521
        %v1523 = vunpack.c.l.b16 %v1514
        %v1524 = vpack.c.b16 %v1523, %v1523
        %1525 = vrot.lane.b32.xlu0 %v1524, 24
        %v1526 = vpop.permute.xlu0 %1525
        %v1529 = vsel %vm1163, %v1505, %v1518
        %vm1530 = vcmask 130048
        %v1532 = vsel %vm1530, %v1529, %v1522
        %vm1533 = vcmask 195584
        %v1535 = vsel %vm1533, %v1532, %v1526
        %v1536 = vld [vmem:[%s9] sm:$0xf]
        %v1537 = vld [vmem:[%s9 + $0x4] sm:$0xf]
        %v1538 = vld [vmem:[%s9 + $0x8] sm:$0xf]
        %v1539 = vld [vmem:[%s9 + $0xc] sm:$0xf]
        %v1540 = vld [vmem:[%s10] sm:$0x1]
        %v1542 = vperm.slane %v1540, 0
        %v1548 = vunpack.c.l.b16 %v1536
        %v1549 = vunpack.c.l.b16 %v1537
        %v1550 = vunpack.c.l.b16 %v1538
        %v1551 = vunpack.c.l.b16 %v1539
        %v1552 = vpack.c.b16 %v1549, %v1548
        %v1553 = vpack.c.b16 %v1551, %v1550
        %v1556 = vsel %vm617, %v1535, 0
        %1558 = vmatpush.bf16.msra.mxu0 0
        %1559 = vmatpush.bf16.msra.mxu0 0
        %1560 = vmatpush.bf16.msra.mxu0 0
        %1561 = vmatpush.bf16.msra.mxu0 0
        %1562 = vmatpush.bf16.msra.mxu0 0
        %1563 = vmatpush.bf16.msra.mxu0 0
        %1564 = vmatpush.bf16.msra.mxu0 %v1553
        %1565 = vmatpush.bf16.msra.mxu0 %v1552
        %1566 = vmatmul.bf16.gmra.mxu0 %v1556
        %v1567 = vpop.f32.mrf.mxu0
        %v1568 = vadd.f32 %v1542, %v1567
        %v1569 = vpop.f32.mrf.mxu0
        %1570 = vdwg.mxu0
        %v1571 = vadd.f32 %v614, %v1568
        %v1572 = vld [vmem:[%s11] sm:$0x1]
        %v1573 = vld [vmem:[%s12] sm:$0x1]
        %v1574 = vsel %vm617, %v1571, 0.0
        %1575 = vadd.xlane.f32.xlu0 %v1574
        %v1576 = vpop.xlane.xlu0 %1575
        %v1577 = vmul.f32 %v1576, %v627
        %v1578 = vsub.f32 %v1571, %v1577
        %v1579 = vmul.f32 %v1578, %v1578
        %v1580 = vsel %vm617, %v1579, 0.0
        %1581 = vadd.xlane.f32.xlu0 %v1580
        %v1582 = vpop.xlane.xlu0 %1581
        %v1583 = vmul.f32 %v1582, %v627
        %v1584 = vadd.f32 %v1583, 1e-05
        %v1585 = vrsqrt.pop %v1584
        %v1586 = vmul.f32 %v1585, %v1584
        %v1587 = vmul.f32 %v1586, %v1585
        %v1588 = vmul.f32 0.5, %v1587
        %v1589 = vsub.f32 1.5, %v1588
        %v1590 = vmul.f32 %v1585, %v1589
        %vm1591 = vweird.f32 %v1584
        %vm1592 = vweird.f32 %v1585
        %vm1593 = vmor %vm1591, %vm1592
        %v1594 = vsel %vm1593, %v1585, %v1590
        %v1595 = vmul.f32 %v1578, %v1594
        %v1597 = vperm.slane %v1572, 0
        %v1599 = vmul.f32 %v1595, %v1597
        %v1601 = vperm.slane %v1573, 0
        %v1603 = vadd.f32 %v1599, %v1601
        %v1604 = vpack.c.bf16 %v1603, %v1603
        %v1605 = vld [vmem:[#allocation9] sm:$0xf]
        %v1606 = vld [vmem:[#allocation9 + $0x4] sm:$0xf]
        %v1607 = vld [vmem:[#allocation9 + $0x8] sm:$0xf]
        %v1608 = vld [vmem:[#allocation9 + $0xc] sm:$0xf]
        %v1609 = vld [vmem:[%s14] sm:$0x1]
        %v1611 = vperm.slane %v1609, 0
        %v1617 = vunpack.c.l.b16 %v1605
        %v1618 = vunpack.c.l.b16 %v1606
        %v1619 = vunpack.c.l.b16 %v1607
        %v1620 = vunpack.c.l.b16 %v1608
        %v1621 = vpack.c.b16 %v1618, %v1617
        %v1622 = vpack.c.b16 %v1620, %v1619
        %v1626 = vsel %vm617, %v1604, 0
        %1628 = vmatpush.bf16.msra.mxu0 0
        %1629 = vmatpush.bf16.msra.mxu0 0
        %1630 = vmatpush.bf16.msra.mxu0 0
        %1631 = vmatpush.bf16.msra.mxu0 0
        %1632 = vmatpush.bf16.msra.mxu0 0
        %1633 = vmatpush.bf16.msra.mxu0 0
        %1634 = vmatpush.bf16.msra.mxu0 %v1622
        %1635 = vmatpush.bf16.msra.mxu0 %v1621
        %1636 = vmatmul.bf16.gmra.mxu0 %v1626
        %v1637 = vpop.f32.mrf.mxu0
        %v1638 = vadd.f32 %v1611, %v1637
        %v1639 = vpop.f32.mrf.mxu0
        %1640 = vdwg.mxu0
        %v1641 = vmul.f32 %v1638, 0.5
        %v1642 = vmul.f32 %v1638, 0.70710677
        %v1643 = vand.u32 2147483647, %v1642
        %v1644 = vmul.f32 %v1643, 0.3275911
        %v1645 = vadd.f32 %v1644, 1.0
        %v1646 = vrcp.pop %v1645
        %v1647 = vmul.f32 %v1645, %v1646
        %v1648 = vsub.f32 1.0, %v1647
        %v1649 = vmul.f32 %v1646, %v1648
        %v1650 = vadd.f32 %v1646, %v1649
        %vm1651 = vweird.f32 %v1645
        %vm1652 = vweird.f32 %v1646
        %vm1653 = vmor %vm1651, %vm1652
        %v1654 = vsel %vm1653, %v1646, %v1650
        %v1655 = vand.u32 2147483647, %v1645
        %vm1656 = vcmp.eq.f32.partialorder %v1655, 8.507059e+37
        %v1657 = vand.u32 %v1645, 2147483648
        %v1658 = vor.u32 1.1754944e-38, %v1657
        %v1659 = vsel %vm1656, %v1658, %v1654
        %v1660 = vmul.f32 1.0, %v1659
        %v1661 = vmul.f32 %v1660, 1.0614054
        %v1662 = vadd.f32 %v1661, -1.4531521
        %v1663 = vmul.f32 %v1662, %v1660
        %v1664 = vadd.f32 %v1663, 1.4214138
        %v1665 = vmul.f32 %v1664, %v1660
        %v1666 = vadd.f32 %v1665, -0.28449672
        %v1667 = vmul.f32 %v1666, %v1660
        %v1668 = vadd.f32 %v1667, 0.2548296
        %v1669 = vmul.f32 %v1668, %v1660
        %v1670 = vsub.f32 0.0, %v1643
        %v1671 = vmul.f32 %v1670, %v1643
        %v1672 = vmul.f32 %v1671, 1.442695
        %v1673 = vpow.pop %v1672
        %v1674 = vmul.f32 %v1669, %v1673
        %v1675 = vsub.f32 1.0, %v1674
        %vm1676 = vcmp.ge.f32.partialorder %v1642, 0.0
        %v1677 = vsub.f32 0.0, %v1675
        %v1678 = vsel %vm1676, %v1675, %v1677
        %v1679 = vadd.f32 %v1678, 1.0
        %v1680 = vmul.f32 %v1641, %v1679
        %v1681 = vpack.c.bf16 %v1680, %v1680
        %v1682 = vld [vmem:[%s15] sm:$0xf]
        %v1683 = vld [vmem:[%s15 + $0x4] sm:$0xf]
        %v1684 = vld [vmem:[%s15 + $0x8] sm:$0xf]
        %v1685 = vld [vmem:[%s15 + $0xc] sm:$0xf]
        %v1686 = vld [vmem:[%s15 + $0x10] sm:$0xf]
        %v1687 = vld [vmem:[%s15 + $0x14] sm:$0xf]
        %v1688 = vld [vmem:[%s15 + $0x18] sm:$0xf]
        %v1689 = vld [vmem:[%s15 + $0x1c] sm:$0xf]
        %v1690 = vld [vmem:[%s15 + $0x20] sm:$0xf]
        %v1691 = vld [vmem:[%s15 + $0x24] sm:$0xf]
        %v1692 = vld [vmem:[%s15 + $0x28] sm:$0xf]
        %v1693 = vld [vmem:[%s15 + $0x2c] sm:$0xf]
        %v1694 = vld [vmem:[%s15 + $0x30] sm:$0xf]
        %v1695 = vld [vmem:[%s15 + $0x34] sm:$0xf]
        %v1696 = vld [vmem:[%s15 + $0x38] sm:$0xf]
        %v1697 = vld [vmem:[%s15 + $0x3c] sm:$0xf]
        %v1698 = vld [vmem:[%s16] sm:$0x1]
        %v1700 = vperm.slane %v1698, 0
        %v1718 = vunpack.c.l.b16 %v1682
        %v1719 = vunpack.c.l.b16 %v1683
        %v1720 = vunpack.c.l.b16 %v1684
        %v1721 = vunpack.c.l.b16 %v1685
        %v1722 = vunpack.c.l.b16 %v1686
        %v1723 = vunpack.c.l.b16 %v1687
        %v1724 = vunpack.c.l.b16 %v1688
        %v1725 = vunpack.c.l.b16 %v1689
        %v1726 = vunpack.c.l.b16 %v1690
        %v1727 = vunpack.c.l.b16 %v1691
        %v1728 = vunpack.c.l.b16 %v1692
        %v1729 = vunpack.c.l.b16 %v1693
        %v1730 = vunpack.c.l.b16 %v1694
        %v1731 = vunpack.c.l.b16 %v1695
        %v1732 = vunpack.c.l.b16 %v1696
        %v1733 = vunpack.c.l.b16 %v1697
        %v1734 = vpack.c.b16 %v1719, %v1718
        %v1735 = vpack.c.b16 %v1721, %v1720
        %v1736 = vpack.c.b16 %v1723, %v1722
        %v1737 = vpack.c.b16 %v1725, %v1724
        %v1738 = vpack.c.b16 %v1727, %v1726
        %v1739 = vpack.c.b16 %v1729, %v1728
        %v1740 = vpack.c.b16 %v1731, %v1730
        %v1741 = vpack.c.b16 %v1733, %v1732
        %1750 = vmatpush.bf16.msra.mxu0 %v1741
        %1751 = vmatpush.bf16.msra.mxu0 %v1740
        %1752 = vmatpush.bf16.msra.mxu0 %v1739
        %1753 = vmatpush.bf16.msra.mxu0 %v1738
        %1754 = vmatpush.bf16.msra.mxu0 %v1737
        %1755 = vmatpush.bf16.msra.mxu0 %v1736
        %1756 = vmatpush.bf16.msra.mxu0 %v1735
        %1757 = vmatpush.bf16.msra.mxu0 %v1734
        %1758 = vmatmul.bf16.gmra.mxu0 %v1681
        %v1759 = vpop.f32.mrf.mxu0
        %v1760 = vadd.f32 %v1700, %v1759
        %v1761 = vpop.f32.mrf.mxu0
        %1762 = vdwg.mxu0
        %v1763 = vadd.f32 %v1571, %v1760
        %1764 = vst.msk [vmem:[%s602] sm:$0xff] %vm617, %v1763
        %vm1765 = vcmask 253952
        %1766 = vst.msk [vmem:[%s608] sm:$0x1] %vm1765, %v1763
        %s1767 = sand.u32 %s408, 1
        %s1768 = scalar_lea.sflag [#allocation8], %s1767
        %s1769 = sand.u32 %s408, 1
        %s1770 = smul.addr %s1769, 8
        %s1771 = scalar_lea.vmem [#allocation11], %s1770
        %s1772 = sand.u32 %s434, 1
        %s1773 = scalar_lea.sflag [#allocation13], %s1772
        %s1774 = sand.u32 %s434, 1
        %s1775 = scalar_lea.vmem [#allocation12], %s1774
        // Predicated region
        $region97: #{tpu_custom_call.1} parent=87 // pred_check
          %p1776 = pneg %p418
        $region98: #{tpu_custom_call.1} parent=87 // pred_check_branch
          %1778 = sbr.rel (%p1776) target = $region100
        $region99: #{tpu_custom_call.1} parent=87 // pred_region
          %1780 = vsyncadd %s1768, 0
          %s1781 = smul.addr %s38, 8
          %s1782 = scalar_lea.hbm %s17, %s1781
          %s1784 = sshll.u32 %s1771, 4
          %s1785 = int_to_ptr.vmem [resolvable:$true] %s1784
          %s1786 = sshll.u32 %s1782, 4
          %s1787 = int_to_ptr.hbm [resolvable:$true] %s1786
          %1789 = dma.vmem_to_hbm [thread:$0]  %s1785, 128, %s1787, %s1768
        $region100: #{tpu_custom_call.1} parent=87 // pred_fallthru
          _
        // Predicated region
        $region101: #{tpu_custom_call.1} parent=87 // pred_check
          %p1790 = pneg %p444
        $region102: #{tpu_custom_call.1} parent=87 // pred_check_branch
          %1792 = sbr.rel (%p1790) target = $region104
        $region103: #{tpu_custom_call.1} parent=87 // pred_region
          %1794 = vsyncadd %s1773, 0
          %s1795 = scalar_lea.hbm %s18, %s38
          %s1797 = sshll.u32 %s1775, 4
          %s1798 = int_to_ptr.vmem [resolvable:$true] %s1797
          %s1799 = sshll.u32 %s1795, 4
          %s1800 = int_to_ptr.hbm [resolvable:$true] %s1799
          %1802 = dma.vmem_to_hbm [thread:$0]  %s1798, 16, %s1800, %s1773
        $region104: #{tpu_custom_call.1} parent=87 // pred_fallthru
          _
      $region88: #{tpu_custom_call.1} parent=5 // pred_fallthru
        _
      %p1803 = scmp.le.s32.totalorder 2, %s33
      // Predicated region
      $region105: #{tpu_custom_call.1} parent=5 // pred_check
        %p1804 = pneg %p1803
      $region106: #{tpu_custom_call.1} parent=5 // pred_check_branch
        %1806 = sbr.rel (%p1804) target = $region108
      $region107: #{tpu_custom_call.1} parent=5 // pred_region
        %s1807 = ssub.s32 %s33, 2
        // Predicated region
        $region109: #{tpu_custom_call.1} parent=107 // pred_check
          %p1808 = pneg %p424
        $region110: #{tpu_custom_call.1} parent=107 // pred_check_branch
          %1810 = sbr.rel (%p1808) target = $region112
        $region111: #{tpu_custom_call.1} parent=107 // pred_region
          %s1811 = sand.u32 %s409, 1
          %s1812 = scalar_lea.sflag [#allocation8], %s1811
          %s1813 = sand.u32 %s409, 1
          %s1814 = smul.addr %s1813, 8
          %s1815 = scalar_lea.vmem [#allocation11], %s1814
          %1817 = dma.done %s1812, 128
        $region112: #{tpu_custom_call.1} parent=107 // pred_fallthru
          _
        // Predicated region
        $region113: #{tpu_custom_call.1} parent=107 // pred_check
          %p1818 = pneg %p450
        $region114: #{tpu_custom_call.1} parent=107 // pred_check_branch
          %1820 = sbr.rel (%p1818) target = $region116
        $region115: #{tpu_custom_call.1} parent=107 // pred_region
          %s1821 = sand.u32 %s435, 1
          %s1822 = scalar_lea.sflag [#allocation13], %s1821
          %s1823 = sand.u32 %s435, 1
          %s1824 = scalar_lea.vmem [#allocation12], %s1823
          %1826 = dma.done %s1822, 16
        $region116: #{tpu_custom_call.1} parent=107 // pred_fallthru
          _
      $region108: #{tpu_custom_call.1} parent=5 // pred_fallthru
        _
    $region6: #{tpu_custom_call.1} parent=1 // loop_footer
      %s37 = sadd.s32 1, %s33
    $region7: #{tpu_custom_call.1} parent=1 // loop_footer_branch
      %32 = sbr.rel target = $region3
    $region8: #{tpu_custom_call.1} parent=1 // loop_exit
      _
    %1827 = vsyncpa [#allocation7], 1
    %s1828 = scalar_lea.sflag [#allocation7], 1
    %1829 = vsyncpa %s1828, 1
    %1830 = vsyncpa [#allocation10], 1
    %1831 = vsyncpa [#allocation8], 1
    %s1832 = scalar_lea.sflag [#allocation8], 1
    %1833 = vsyncpa %s1832, 1
    %1834 = vsyncpa [#allocation13], 1
    %s1835 = scalar_lea.sflag [#allocation13], 1
    %1836 = vsyncpa %s1835, 1

</llo_original>
